<compile_context>
chip_gen: v6e
topology: v6e:2x2x1
jax: 0.10.0
libtpu: 0.0.40
codegen_flags: <defaults>
</compile_context>

<pallas_src>
import functools

import jax
import jax.numpy as jnp
from jax.experimental import pallas as pl
from jax.experimental.pallas import tpu as pltpu


def _round_up(x, m):
    return ((x + m - 1) // m) * m


# ----------------------------------------------------------------------------
# Pallas LSTM layer kernel.
# Grid: (batch_tiles [parallel], time_chunks [arbitrary]).
# Each grid step processes `chunk` timesteps; h/c live in f32 VMEM scratch across
# the sequential time axis. Gates: one fused bf16 MXU matmul per timestep.
# ----------------------------------------------------------------------------
def _lstm_chunk_kernel(x_ref, w_ref, b_ref, h0_ref, c0_ref,
                       y_ref, hn_ref, cn_ref,
                       h_scr, c_scr, xh_scr,
                       *, hidden_pad, in_pad, chunk, seq_len, masked):
    chunk_idx = pl.program_id(1)

    @pl.when(chunk_idx == 0)
    def _():
        h_scr[...] = h0_ref[...]
        c_scr[...] = c0_ref[...]

    Hp = hidden_pad
    Ip = in_pad
    w = w_ref[...]        # (Ip+Hp, 4Hp) bf16 — loaded once per chunk
    bias = b_ref[...]     # (1, 4Hp) f32

    def step(t, carry):
        h = h_scr[...]    # (Bt, Hp) f32
        c = c_scr[...]    # (Bt, Hp) f32

        # Fused [x_t | h] MXU operand; both halves are 128-lane aligned writes.
        xh_scr[:, 0:Ip] = x_ref[t]
        xh_scr[:, Ip:Ip + Hp] = h.astype(xh_scr.dtype)

        # gates = [x_t, h] @ [W_ih; W_hh] + (b_ih + b_hh)   -> (Bt, 4Hp) f32
        gates = jnp.dot(xh_scr[...], w,
                        preferred_element_type=jnp.float32) + bias

        i_g = jax.nn.sigmoid(gates[:, 0 * Hp:1 * Hp])
        f_g = jax.nn.sigmoid(gates[:, 1 * Hp:2 * Hp])
        g_g = jnp.tanh(gates[:, 2 * Hp:3 * Hp])
        o_g = jax.nn.sigmoid(gates[:, 3 * Hp:4 * Hp])

        c_new = f_g * c + i_g * g_g
        h_new = o_g * jnp.tanh(c_new)

        if masked:  # only emitted when T was padded up to a multiple of `chunk`
            valid = (chunk_idx * chunk + t) < seq_len
            h_new = jnp.where(valid, h_new, h)
            c_new = jnp.where(valid, c_new, c)

        h_scr[...] = h_new
        c_scr[...] = c_new
        y_ref[t] = h_new.astype(y_ref.dtype)
        return carry

    jax.lax.fori_loop(0, chunk, step, 0, unroll=True)

    # Constant out index_map along the time axis -> resident; last write wins.
    hn_ref[...] = h_scr[...]
    cn_ref[...] = c_scr[...]


def lstm_layer(x, h0, c0, w, b, *, time_chunk=16, batch_tile=None,
               out_dtype=jnp.bfloat16):
    """One LSTM layer over the full (padded) sequence.

    x     : (T, Bp, Ip)      bf16   (feature dim padded to 128, batch padded to 8)
    h0/c0 : (Bp, Hp)         f32
    w     : (Ip+Hp, 4*Hp)    bf16   fused [W_ih; W_hh] (PyTorch weights transposed)
    b     : (1, 4*Hp)        f32    b_ih + b_hh (gate-padded)
    returns y (T, Bp, Hp) bf16, h_n (Bp, Hp) f32, c_n (Bp, Hp) f32
    """
    T, Bp, Ip = x.shape
    Hp = h0.shape[-1]
    assert w.shape == (Ip + Hp, 4 * Hp) and b.shape == (1, 4 * Hp)
    assert Bp % 8 == 0 and Ip % 128 == 0 and Hp % 128 == 0

    Bt = Bp if batch_tile is None else batch_tile
    assert Bp % Bt == 0 and Bt % 8 == 0
    nbt = Bp // Bt

    # Pick chunk so padded length has at most (nchunks-1) wasted steps.
    nchunks = max(1, -(-T // max(1, time_chunk)))
    Tc = -(-T // nchunks)
    T_pad = nchunks * Tc
    if T_pad != T:
        x = jnp.concatenate(
            [x, jnp.zeros((T_pad - T, Bp, Ip), x.dtype)], axis=0)

    kernel = functools.partial(
        _lstm_chunk_kernel, hidden_pad=Hp, in_pad=Ip, chunk=Tc,
        seq_len=T, masked=(T_pad != T))

    y, h_n, c_n = pl.pallas_call(
        kernel,
        out_shape=(
            jax.ShapeDtypeStruct((T_pad, Bp, Hp), out_dtype),
            jax.ShapeDtypeStruct((Bp, Hp), jnp.float32),
            jax.ShapeDtypeStruct((Bp, Hp), jnp.float32),
        ),
        grid_spec=pltpu.PrefetchScalarGridSpec(
            num_scalar_prefetch=0,
            grid=(nbt, nchunks),
            in_specs=[
                pl.BlockSpec((Tc, Bt, Ip), lambda bt, c: (c, bt, 0)),       # x chunk
                pl.BlockSpec((Ip + Hp, 4 * Hp), lambda bt, c: (0, 0)),      # fused W
                pl.BlockSpec((1, 4 * Hp), lambda bt, c: (0, 0)),            # bias
                pl.BlockSpec((Bt, Hp), lambda bt, c: (bt, 0)),              # h0
                pl.BlockSpec((Bt, Hp), lambda bt, c: (bt, 0)),              # c0
            ],
            out_specs=[
                pl.BlockSpec((Tc, Bt, Hp), lambda bt, c: (c, bt, 0)),       # y chunk
                pl.BlockSpec((Bt, Hp), lambda bt, c: (bt, 0)),              # h_n
                pl.BlockSpec((Bt, Hp), lambda bt, c: (bt, 0)),              # c_n
            ],
            scratch_shapes=[
                pltpu.VMEM((Bt, Hp), jnp.float32),        # h state
                pltpu.VMEM((Bt, Hp), jnp.float32),        # c state
                pltpu.VMEM((Bt, Ip + Hp), jnp.bfloat16),  # [x|h] MXU staging
            ],
        ),
        compiler_params=pltpu.CompilerParams(
            # batch tiles can be split across TensorCores (v7x); time is a recurrence
            dimension_semantics=("parallel", "arbitrary"),
            # raise further (and re-budget against 64 MiB on v7x) at realistic nhid
            vmem_limit_bytes=32 * 1024 * 1024,
        ),
    )(x, w, b, h0, c0)

    if T_pad != T:
        y = y[:T]
    return y, h_n, c_n


def _pack_lstm_weights(w_ih, w_hh, b_ih, b_hh):
    """Pad each gate block to Hp lanes, pad input dims to 128, fuse [W_ih; W_hh], cast bf16."""
    I, four_h = w_ih.shape
    H = four_h // 4
    Ip = _round_up(I, 128)
    Hp = _round_up(H, 128)
    w = jnp.zeros((Ip + Hp, 4, Hp), jnp.float32)
    w = w.at[:I, :, :H].set(w_ih.reshape(I, 4, H))
    w = w.at[Ip:Ip + H, :, :H].set(w_hh.reshape(H, 4, H))
    w = w.reshape(Ip + Hp, 4 * Hp).astype(jnp.bfloat16)
    b = jnp.zeros((1, 4, Hp), jnp.float32)
    b = b.at[:, :, :H].set((b_ih + b_hh).reshape(1, 4, H))
    b = b.reshape(1, 4 * Hp)
    return w, b, Ip, Hp


# ----------------------------------------------------------------------------
# RNNModel (JAX/Pallas) — mirrors RNNModel.forward in eval mode.
# ----------------------------------------------------------------------------
class RNNModelPallas:
    def __init__(self, ntoken, emsize, nhid, nlayers, key, time_chunk=16):
        self.ntoken = ntoken
        self.emsize = emsize
        self.nhid = nhid
        self.nlayers = nlayers
        self.time_chunk = time_chunk

        keys = jax.random.split(key, 2 + 4 * nlayers)
        kidx = 0
        # encoder (embedding) weight: (ntoken, emsize)
        self.encoder_weight = 0.1 * jax.random.normal(
            keys[kidx], (ntoken, emsize), jnp.float32); kidx += 1
        # decoder weight (constructed like the PyTorch module, unused in forward)
        self.decoder_weight = 0.1 * jax.random.normal(
            keys[kidx], (ntoken, emsize), jnp.float32); kidx += 1

        # Logical f32 params (reference / parity) + packed bf16 kernel params.
        self.rnn_params = []
        self.kernel_params = []
        for l in range(nlayers):
            in_sz = emsize if l == 0 else nhid
            hid_sz = nhid if l != nlayers - 1 else emsize
            w_ih = 0.1 * jax.random.normal(keys[kidx], (in_sz, 4 * hid_sz), jnp.float32); kidx += 1
            w_hh = 0.1 * jax.random.normal(keys[kidx], (hid_sz, 4 * hid_sz), jnp.float32); kidx += 1
            b_ih = 0.1 * jax.random.normal(keys[kidx], (1, 4 * hid_sz), jnp.float32); kidx += 1
            b_hh = 0.1 * jax.random.normal(keys[kidx], (1, 4 * hid_sz), jnp.float32); kidx += 1
            self.rnn_params.append((w_ih, w_hh, b_ih + b_hh, hid_sz))
            w_f, b_f, Ip, Hp = _pack_lstm_weights(w_ih, w_hh, b_ih, b_hh)
            self.kernel_params.append((w_f, b_f, in_sz, hid_sz, Ip, Hp))

    def init_hidden(self, batch):
        hidden = []
        for l in range(self.nlayers):
            hid_sz = self.nhid if l != self.nlayers - 1 else self.emsize
            hidden.append((jnp.zeros((batch, hid_sz), jnp.float32),
                           jnp.zeros((batch, hid_sz), jnp.float32)))
        return hidden

    def forward(self, tokens, hidden, return_h=False):
        # tokens: (T, B) int32
        T, B = tokens.shape
        Bp = _round_up(max(B, 8), 8)
        Ep = _round_up(self.emsize, 128)

        # embedded_dropout with dropout=0 (eval) == plain embedding lookup; idrop/
        # hdrop/odrop are identity in eval mode (LockedDropout early-return).
        emb = jnp.take(self.encoder_weight, tokens, axis=0)          # (T, B, E) f32
        x = jnp.zeros((T, Bp, Ep), jnp.bfloat16)
        x = x.at[:, :B, :self.emsize].set(emb.astype(jnp.bfloat16))  # padded bf16

        new_hidden, raw_outputs, outputs = [], [], []
        for l, (w_f, b_f, in_sz, hid_sz, Ip, Hp) in enumerate(self.kernel_params):
            h0, c0 = hidden[l]                                       # (B, H) f32
            h0p = jnp.zeros((Bp, Hp), jnp.float32).at[:B, :hid_sz].set(h0)
            c0p = jnp.zeros((Bp, Hp), jnp.float32).at[:B, :hid_sz].set(c0)
            y, h_n, c_n = lstm_layer(x, h0p, c0p, w_f, b_f,
                                     time_chunk=self.time_chunk)
            new_hidden.append((h_n[:B, :hid_sz], c_n[:B, :hid_sz]))
            raw_out = y[:, :B, :hid_sz].astype(jnp.float32)
            raw_outputs.append(raw_out)
            if l != self.nlayers - 1:
                outputs.append(raw_out)          # hdrop == identity (eval)
            x = y                                # inter-layer activations stay padded bf16

        hidden = new_hidden
        output = raw_outputs[-1]                 # odrop == identity (eval)
        outputs.append(output)
        result = output.reshape(T * B, output.shape[-1])
        if return_h:
            return result, hidden, raw_outputs, outputs
        return result, hidden


# ----------------------------------------------------------------------------
# Pure-JAX reference LSTM (mirrors the kernel's bf16 rounding points).
# ----------------------------------------------------------------------------
def _ref_lstm_layer(x, h0, c0, w_ih, w_hh, b):
    H = h0.shape[-1]
    w_i = w_ih.astype(jnp.bfloat16).astype(jnp.float32)
    w_h = w_hh.astype(jnp.bfloat16).astype(jnp.float32)

    def step(carry, x_t):
        h, c = carry
        x_b = x_t.astype(jnp.bfloat16).astype(jnp.float32)
        h_b = h.astype(jnp.bfloat16).astype(jnp.float32)
        gates = x_b @ w_i + h_b @ w_h + b[0]
        i = jax.nn.sigmoid(gates[:, 0 * H:1 * H])
        f = jax.nn.sigmoid(gates[:, 1 * H:2 * H])
        g = jnp.tanh(gates[:, 2 * H:3 * H])
        o = jax.nn.sigmoid(gates[:, 3 * H:4 * H])
        c = f * c + i * g
        h = o * jnp.tanh(c)
        return (h, c), h

    (h_n, c_n), ys = jax.lax.scan(step, (h0, c0), x)
    return ys, (h_n, c_n)


if __name__ == "__main__":
    # Small shapes: vocab=100, seq=8, batch=4, emsize=32, nhid=64, 2 layers.
    NTOKEN, T, B, EMSIZE, NHID, NLAYERS = 100, 8, 4, 32, 64, 2

    key = jax.random.PRNGKey(0)
    k_model, k_tok = jax.random.split(key)

    model = RNNModelPallas(NTOKEN, EMSIZE, NHID, NLAYERS, k_model)
    tokens = jax.random.randint(k_tok, (T, B), 0, NTOKEN, dtype=jnp.int32)
    hidden = model.init_hidden(B)

    result, new_hidden = model.forward(tokens, hidden)
    result = jax.block_until_ready(result)
    for (h, c) in new_hidden:
        jax.block_until_ready(h)
        jax.block_until_ready(c)

    # Shape checks (matches PyTorch: result is (T*B, emsize) since last layer is emsize wide)
    assert result.shape == (T * B, EMSIZE), result.shape
    assert new_hidden[0][0].shape == (B, NHID)
    assert new_hidden[-1][0].shape == (B, EMSIZE)

    # Numerical check vs pure-JAX reference (bf16 weights/activations, f32 state).
    emb = jnp.take(model.encoder_weight, tokens, axis=0)
    ref_out = emb
    ref_hidden = model.init_hidden(B)
    for l, (w_ih, w_hh, b, _h) in enumerate(model.rnn_params):
        h0, c0 = ref_hidden[l]
        ref_out, _ = _ref_lstm_layer(ref_out, h0, c0, w_ih, w_hh, b)
        # mirror the kernel's bf16 storage of layer outputs
        ref_out = ref_out.astype(jnp.bfloat16).astype(jnp.float32)
    ref_result = ref_out.reshape(T * B, -1)
    max_err = float(jnp.max(jnp.abs(ref_result - result)))
    assert max_err < 2e-2, max_err

    print("KERNEL_OK")
</pallas_src>

<mosaic_0001>
module attributes {stable_mosaic.version = 11 : i64} {
  func.func @_lstm_chunk_kernel(%arg0: i32, %arg1: i32, %arg2: memref<8x8x128xbf16, #tpu.memory_space<vmem>>, %arg3: memref<256x512xbf16, #tpu.memory_space<vmem>>, %arg4: memref<1x512xf32, #tpu.memory_space<vmem>>, %arg5: memref<8x128xf32, #tpu.memory_space<vmem>>, %arg6: memref<8x128xf32, #tpu.memory_space<vmem>>, %arg7: memref<8x8x128xbf16, #tpu.memory_space<vmem>>, %arg8: memref<8x128xf32, #tpu.memory_space<vmem>>, %arg9: memref<8x128xf32, #tpu.memory_space<vmem>>, %arg10: memref<8x128xf32, #tpu.memory_space<vmem>>, %arg11: memref<8x128xf32, #tpu.memory_space<vmem>>, %arg12: memref<8x256xbf16, #tpu.memory_space<vmem>>) attributes {dimension_semantics = [#tpu.dimension_semantics<parallel>, #tpu.dimension_semantics<arbitrary>], iteration_bounds = array<i64: 1, 1>, scalar_prefetch = 0 : i64, scratch_operands = 3 : i64, tpu.core_type = #tpu.core_type<tc>, window_params = [{transform_indices = @transform_0, window_bounds = array<i64: 8, 8, 128>}, {pipeline_mode = #tpu.pipeline_mode<synchronous>, transform_indices = @transform_1, window_bounds = array<i64: 256, 512>}, {pipeline_mode = #tpu.pipeline_mode<synchronous>, transform_indices = @transform_2, window_bounds = array<i64: 1, 512>}, {transform_indices = @transform_3, window_bounds = array<i64: 8, 128>}, {transform_indices = @transform_4, window_bounds = array<i64: 8, 128>}, {transform_indices = @transform_5, window_bounds = array<i64: 8, 8, 128>}, {transform_indices = @transform_6, window_bounds = array<i64: 8, 128>}, {transform_indices = @transform_7, window_bounds = array<i64: 8, 128>}]} {
    %c0_i32 = arith.constant 0 : i32
    %0 = arith.cmpi eq, %arg1, %c0_i32 : i32
    %1 = arith.extui %0 : i1 to i32
    %c0_i32_0 = arith.constant 0 : i32
    %2 = arith.cmpi ne, %1, %c0_i32_0 : i32
    scf.if %2 {
      %c0_187 = arith.constant 0 : index
      %c0_188 = arith.constant 0 : index
      %361 = vector.load %arg5[%c0_187, %c0_188] : memref<8x128xf32, #tpu.memory_space<vmem>>, vector<8x128xf32>
      %c0_189 = arith.constant 0 : index
      %c0_190 = arith.constant 0 : index
      %362 = vector.load %arg10[%c0_189, %c0_190] : memref<8x128xf32, #tpu.memory_space<vmem>>, vector<8x128xf32>
      tpu.vector_store %arg10[%c0_189, %c0_190], %361 {strides = array<i32>} : memref<8x128xf32, #tpu.memory_space<vmem>>, vector<8x128xf32>,
      %c0_191 = arith.constant 0 : index
      %c0_192 = arith.constant 0 : index
      %363 = vector.load %arg6[%c0_191, %c0_192] : memref<8x128xf32, #tpu.memory_space<vmem>>, vector<8x128xf32>
      %c0_193 = arith.constant 0 : index
      %c0_194 = arith.constant 0 : index
      %364 = vector.load %arg11[%c0_193, %c0_194] : memref<8x128xf32, #tpu.memory_space<vmem>>, vector<8x128xf32>
      tpu.vector_store %arg11[%c0_193, %c0_194], %363 {strides = array<i32>} : memref<8x128xf32, #tpu.memory_space<vmem>>, vector<8x128xf32>,
    } else {
    }
    %c0 = arith.constant 0 : index
    %c0_1 = arith.constant 0 : index
    %3 = vector.load %arg3[%c0, %c0_1] : memref<256x512xbf16, #tpu.memory_space<vmem>>, vector<256x512xbf16>
    %c0_2 = arith.constant 0 : index
    %c0_3 = arith.constant 0 : index
    %4 = vector.load %arg4[%c0_2, %c0_3] : memref<1x512xf32, #tpu.memory_space<vmem>>, vector<1x512xf32>
    %c0_i32_4 = arith.constant 0 : i32
    %c0_5 = arith.constant 0 : index
    %c0_6 = arith.constant 0 : index
    %5 = vector.load %arg10[%c0_5, %c0_6] : memref<8x128xf32, #tpu.memory_space<vmem>>, vector<8x128xf32>
    %c0_7 = arith.constant 0 : index
    %c0_8 = arith.constant 0 : index
    %6 = vector.load %arg11[%c0_7, %c0_8] : memref<8x128xf32, #tpu.memory_space<vmem>>, vector<8x128xf32>
    %7 = arith.index_cast %c0_i32_4 : i32 to index
    %c0_9 = arith.constant 0 : index
    %c0_10 = arith.constant 0 : index
    %8 = vector.load %arg2[%7, %c0_9, %c0_10] : memref<8x8x128xbf16, #tpu.memory_space<vmem>>, vector<1x8x128xbf16>
    %9 = vector.shape_cast %8 : vector<1x8x128xbf16> to vector<8x128xbf16>
    %c0_11 = arith.constant 0 : index
    %c0_12 = arith.constant 0 : index
    %10 = vector.load %arg12[%c0_11, %c0_12] : memref<8x256xbf16, #tpu.memory_space<vmem>>, vector<8x128xbf16>
    tpu.vector_store %arg12[%c0_11, %c0_12], %9 {strides = array<i32>} : memref<8x256xbf16, #tpu.memory_space<vmem>>, vector<8x128xbf16>,
    %11 = arith.truncf %5 : vector<8x128xf32> to vector<8x128xbf16>
    %c0_13 = arith.constant 0 : index
    %c128 = arith.constant 128 : index
    %12 = vector.load %arg12[%c0_13, %c128] : memref<8x256xbf16, #tpu.memory_space<vmem>>, vector<8x128xbf16>
    tpu.vector_store %arg12[%c0_13, %c128], %11 {strides = array<i32>} : memref<8x256xbf16, #tpu.memory_space<vmem>>, vector<8x128xbf16>,
    %c0_14 = arith.constant 0 : index
    %c0_15 = arith.constant 0 : index
    %13 = vector.load %arg12[%c0_14, %c0_15] : memref<8x256xbf16, #tpu.memory_space<vmem>>, vector<8x256xbf16>
    %cst = arith.constant dense<0.000000e+00> : vector<8x512xf32>
    %14 = tpu.matmul %13, %3, %cst {dimension_numbers = #tpu.dot_dimension_numbers<[1], [0], [0], [1], [0, 0, 1, 1], [], []>} : vector<8x256xbf16>, vector<256x512xbf16>, vector<8x512xf32> -> vector<8x512xf32>
    %15 = vector.broadcast %4 : vector<1x512xf32> to vector<8x512xf32>
    %16 = arith.addf %14, %15 : vector<8x512xf32>
    %17 = vector.extract_strided_slice %16 {offsets = [0, 0], sizes = [8, 128], strides = [1, 1]} : vector<8x512xf32> to vector<8x128xf32>
    %18 = arith.negf %17 : vector<8x128xf32>
    %19 = math.exp %18 : vector<8x128xf32>
    %cst_16 = arith.constant 1.000000e+00 : f32
    %20 = vector.broadcast %cst_16 : f32 to vector<8x128xf32>
    %21 = arith.addf %20, %19 : vector<8x128xf32>
    %22 = arith.divf %20, %21 : vector<8x128xf32>
    %23 = vector.extract_strided_slice %16 {offsets = [0, 128], sizes = [8, 128], strides = [1, 1]} : vector<8x512xf32> to vector<8x128xf32>
    %24 = arith.negf %23 : vector<8x128xf32>
    %25 = math.exp %24 : vector<8x128xf32>
    %cst_17 = arith.constant 1.000000e+00 : f32
    %26 = vector.broadcast %cst_17 : f32 to vector<8x128xf32>
    %27 = arith.addf %26, %25 : vector<8x128xf32>
    %28 = arith.divf %26, %27 : vector<8x128xf32>
    %29 = vector.extract_strided_slice %16 {offsets = [0, 256], sizes = [8, 128], strides = [1, 1]} : vector<8x512xf32> to vector<8x128xf32>
    %30 = math.tanh %29 : vector<8x128xf32>
    %31 = vector.extract_strided_slice %16 {offsets = [0, 384], sizes = [8, 128], strides = [1, 1]} : vector<8x512xf32> to vector<8x128xf32>
    %32 = arith.negf %31 : vector<8x128xf32>
    %33 = math.exp %32 : vector<8x128xf32>
    %cst_18 = arith.constant 1.000000e+00 : f32
    %34 = vector.broadcast %cst_18 : f32 to vector<8x128xf32>
    %35 = arith.addf %34, %33 : vector<8x128xf32>
    %36 = arith.divf %34, %35 : vector<8x128xf32>
    %37 = arith.mulf %28, %6 : vector<8x128xf32>
    %38 = arith.mulf %22, %30 : vector<8x128xf32>
    %39 = arith.addf %37, %38 : vector<8x128xf32>
    %40 = math.tanh %39 : vector<8x128xf32>
    %41 = arith.mulf %36, %40 : vector<8x128xf32>
    %c0_19 = arith.constant 0 : index
    %c0_20 = arith.constant 0 : index
    %42 = vector.load %arg10[%c0_19, %c0_20] : memref<8x128xf32, #tpu.memory_space<vmem>>, vector<8x128xf32>
    tpu.vector_store %arg10[%c0_19, %c0_20], %41 {strides = array<i32>} : memref<8x128xf32, #tpu.memory_space<vmem>>, vector<8x128xf32>,
    %c0_21 = arith.constant 0 : index
    %c0_22 = arith.constant 0 : index
    %43 = vector.load %arg11[%c0_21, %c0_22] : memref<8x128xf32, #tpu.memory_space<vmem>>, vector<8x128xf32>
    tpu.vector_store %arg11[%c0_21, %c0_22], %39 {strides = array<i32>} : memref<8x128xf32, #tpu.memory_space<vmem>>, vector<8x128xf32>,
    %44 = arith.truncf %41 : vector<8x128xf32> to vector<8x128xbf16>
    %45 = arith.index_cast %c0_i32_4 : i32 to index
    %c0_23 = arith.constant 0 : index
    %c0_24 = arith.constant 0 : index
    %46 = vector.load %arg7[%45, %c0_23, %c0_24] : memref<8x8x128xbf16, #tpu.memory_space<vmem>>, vector<1x8x128xbf16>
    %47 = vector.shape_cast %46 : vector<1x8x128xbf16> to vector<8x128xbf16>
    %48 = vector.shape_cast %44 : vector<8x128xbf16> to vector<1x8x128xbf16>
    tpu.vector_store %arg7[%45, %c0_23, %c0_24], %48 {strides = array<i32>} : memref<8x8x128xbf16, #tpu.memory_space<vmem>>, vector<1x8x128xbf16>,
    %c1_i32 = arith.constant 1 : i32
    %c0_25 = arith.constant 0 : index
    %c0_26 = arith.constant 0 : index
    %49 = vector.load %arg10[%c0_25, %c0_26] : memref<8x128xf32, #tpu.memory_space<vmem>>, vector<8x128xf32>
    %c0_27 = arith.constant 0 : index
    %c0_28 = arith.constant 0 : index
    %50 = vector.load %arg11[%c0_27, %c0_28] : memref<8x128xf32, #tpu.memory_space<vmem>>, vector<8x128xf32>
    %51 = arith.index_cast %c1_i32 : i32 to index
    %c0_29 = arith.constant 0 : index
    %c0_30 = arith.constant 0 : index
    %52 = vector.load %arg2[%51, %c0_29, %c0_30] : memref<8x8x128xbf16, #tpu.memory_space<vmem>>, vector<1x8x128xbf16>
    %53 = vector.shape_cast %52 : vector<1x8x128xbf16> to vector<8x128xbf16>
    %c0_31 = arith.constant 0 : index
    %c0_32 = arith.constant 0 : index
    %54 = vector.load %arg12[%c0_31, %c0_32] : memref<8x256xbf16, #tpu.memory_space<vmem>>, vector<8x128xbf16>
    tpu.vector_store %arg12[%c0_31, %c0_32], %53 {strides = array<i32>} : memref<8x256xbf16, #tpu.memory_space<vmem>>, vector<8x128xbf16>,
    %55 = arith.truncf %49 : vector<8x128xf32> to vector<8x128xbf16>
    %c0_33 = arith.constant 0 : index
    %c128_34 = arith.constant 128 : index
    %56 = vector.load %arg12[%c0_33, %c128_34] : memref<8x256xbf16, #tpu.memory_space<vmem>>, vector<8x128xbf16>
    tpu.vector_store %arg12[%c0_33, %c128_34], %55 {strides = array<i32>} : memref<8x256xbf16, #tpu.memory_space<vmem>>, vector<8x128xbf16>,
    %c0_35 = arith.constant 0 : index
    %c0_36 = arith.constant 0 : index
    %57 = vector.load %arg12[%c0_35, %c0_36] : memref<8x256xbf16, #tpu.memory_space<vmem>>, vector<8x256xbf16>
    %cst_37 = arith.constant dense<0.000000e+00> : vector<8x512xf32>
    %58 = tpu.matmul %57, %3, %cst_37 {dimension_numbers = #tpu.dot_dimension_numbers<[1], [0], [0], [1], [0, 0, 1, 1], [], []>} : vector<8x256xbf16>, vector<256x512xbf16>, vector<8x512xf32> -> vector<8x512xf32>
    %59 = vector.broadcast %4 : vector<1x512xf32> to vector<8x512xf32>
    %60 = arith.addf %58, %59 : vector<8x512xf32>
    %61 = vector.extract_strided_slice %60 {offsets = [0, 0], sizes = [8, 128], strides = [1, 1]} : vector<8x512xf32> to vector<8x128xf32>
    %62 = arith.negf %61 : vector<8x128xf32>
    %63 = math.exp %62 : vector<8x128xf32>
    %cst_38 = arith.constant 1.000000e+00 : f32
    %64 = vector.broadcast %cst_38 : f32 to vector<8x128xf32>
    %65 = arith.addf %64, %63 : vector<8x128xf32>
    %66 = arith.divf %64, %65 : vector<8x128xf32>
    %67 = vector.extract_strided_slice %60 {offsets = [0, 128], sizes = [8, 128], strides = [1, 1]} : vector<8x512xf32> to vector<8x128xf32>
    %68 = arith.negf %67 : vector<8x128xf32>
    %69 = math.exp %68 : vector<8x128xf32>
    %cst_39 = arith.constant 1.000000e+00 : f32
    %70 = vector.broadcast %cst_39 : f32 to vector<8x128xf32>
    %71 = arith.addf %70, %69 : vector<8x128xf32>
    %72 = arith.divf %70, %71 : vector<8x128xf32>
    %73 = vector.extract_strided_slice %60 {offsets = [0, 256], sizes = [8, 128], strides = [1, 1]} : vector<8x512xf32> to vector<8x128xf32>
    %74 = math.tanh %73 : vector<8x128xf32>
    %75 = vector.extract_strided_slice %60 {offsets = [0, 384], sizes = [8, 128], strides = [1, 1]} : vector<8x512xf32> to vector<8x128xf32>
    %76 = arith.negf %75 : vector<8x128xf32>
    %77 = math.exp %76 : vector<8x128xf32>
    %cst_40 = arith.constant 1.000000e+00 : f32
    %78 = vector.broadcast %cst_40 : f32 to vector<8x128xf32>
    %79 = arith.addf %78, %77 : vector<8x128xf32>
    %80 = arith.divf %78, %79 : vector<8x128xf32>
    %81 = arith.mulf %72, %50 : vector<8x128xf32>
    %82 = arith.mulf %66, %74 : vector<8x128xf32>
    %83 = arith.addf %81, %82 : vector<8x128xf32>
    %84 = math.tanh %83 : vector<8x128xf32>
    %85 = arith.mulf %80, %84 : vector<8x128xf32>
    %c0_41 = arith.constant 0 : index
    %c0_42 = arith.constant 0 : index
    %86 = vector.load %arg10[%c0_41, %c0_42] : memref<8x128xf32, #tpu.memory_space<vmem>>, vector<8x128xf32>
    tpu.vector_store %arg10[%c0_41, %c0_42], %85 {strides = array<i32>} : memref<8x128xf32, #tpu.memory_space<vmem>>, vector<8x128xf32>,
    %c0_43 = arith.constant 0 : index
    %c0_44 = arith.constant 0 : index
    %87 = vector.load %arg11[%c0_43, %c0_44] : memref<8x128xf32, #tpu.memory_space<vmem>>, vector<8x128xf32>
    tpu.vector_store %arg11[%c0_43, %c0_44], %83 {strides = array<i32>} : memref<8x128xf32, #tpu.memory_space<vmem>>, vector<8x128xf32>,
    %88 = arith.truncf %85 : vector<8x128xf32> to vector<8x128xbf16>
    %89 = arith.index_cast %c1_i32 : i32 to index
    %c0_45 = arith.constant 0 : index
    %c0_46 = arith.constant 0 : index
    %90 = vector.load %arg7[%89, %c0_45, %c0_46] : memref<8x8x128xbf16, #tpu.memory_space<vmem>>, vector<1x8x128xbf16>
    %91 = vector.shape_cast %90 : vector<1x8x128xbf16> to vector<8x128xbf16>
    %92 = vector.shape_cast %88 : vector<8x128xbf16> to vector<1x8x128xbf16>
    tpu.vector_store %arg7[%89, %c0_45, %c0_46], %92 {strides = array<i32>} : memref<8x8x128xbf16, #tpu.memory_space<vmem>>, vector<1x8x128xbf16>,
    %c2_i32 = arith.constant 2 : i32
    %c0_47 = arith.constant 0 : index
    %c0_48 = arith.constant 0 : index
    %93 = vector.load %arg10[%c0_47, %c0_48] : memref<8x128xf32, #tpu.memory_space<vmem>>, vector<8x128xf32>
    %c0_49 = arith.constant 0 : index
    %c0_50 = arith.constant 0 : index
    %94 = vector.load %arg11[%c0_49, %c0_50] : memref<8x128xf32, #tpu.memory_space<vmem>>, vector<8x128xf32>
    %95 = arith.index_cast %c2_i32 : i32 to index
    %c0_51 = arith.constant 0 : index
    %c0_52 = arith.constant 0 : index
    %96 = vector.load %arg2[%95, %c0_51, %c0_52] : memref<8x8x128xbf16, #tpu.memory_space<vmem>>, vector<1x8x128xbf16>
    %97 = vector.shape_cast %96 : vector<1x8x128xbf16> to vector<8x128xbf16>
    %c0_53 = arith.constant 0 : index
    %c0_54 = arith.constant 0 : index
    %98 = vector.load %arg12[%c0_53, %c0_54] : memref<8x256xbf16, #tpu.memory_space<vmem>>, vector<8x128xbf16>
    tpu.vector_store %arg12[%c0_53, %c0_54], %97 {strides = array<i32>} : memref<8x256xbf16, #tpu.memory_space<vmem>>, vector<8x128xbf16>,
    %99 = arith.truncf %93 : vector<8x128xf32> to vector<8x128xbf16>
    %c0_55 = arith.constant 0 : index
    %c128_56 = arith.constant 128 : index
    %100 = vector.load %arg12[%c0_55, %c128_56] : memref<8x256xbf16, #tpu.memory_space<vmem>>, vector<8x128xbf16>
    tpu.vector_store %arg12[%c0_55, %c128_56], %99 {strides = array<i32>} : memref<8x256xbf16, #tpu.memory_space<vmem>>, vector<8x128xbf16>,
    %c0_57 = arith.constant 0 : index
    %c0_58 = arith.constant 0 : index
    %101 = vector.load %arg12[%c0_57, %c0_58] : memref<8x256xbf16, #tpu.memory_space<vmem>>, vector<8x256xbf16>
    %cst_59 = arith.constant dense<0.000000e+00> : vector<8x512xf32>
    %102 = tpu.matmul %101, %3, %cst_59 {dimension_numbers = #tpu.dot_dimension_numbers<[1], [0], [0], [1], [0, 0, 1, 1], [], []>} : vector<8x256xbf16>, vector<256x512xbf16>, vector<8x512xf32> -> vector<8x512xf32>
    %103 = vector.broadcast %4 : vector<1x512xf32> to vector<8x512xf32>
    %104 = arith.addf %102, %103 : vector<8x512xf32>
    %105 = vector.extract_strided_slice %104 {offsets = [0, 0], sizes = [8, 128], strides = [1, 1]} : vector<8x512xf32> to vector<8x128xf32>
    %106 = arith.negf %105 : vector<8x128xf32>
    %107 = math.exp %106 : vector<8x128xf32>
    %cst_60 = arith.constant 1.000000e+00 : f32
    %108 = vector.broadcast %cst_60 : f32 to vector<8x128xf32>
    %109 = arith.addf %108, %107 : vector<8x128xf32>
    %110 = arith.divf %108, %109 : vector<8x128xf32>
    %111 = vector.extract_strided_slice %104 {offsets = [0, 128], sizes = [8, 128], strides = [1, 1]} : vector<8x512xf32> to vector<8x128xf32>
    %112 = arith.negf %111 : vector<8x128xf32>
    %113 = math.exp %112 : vector<8x128xf32>
    %cst_61 = arith.constant 1.000000e+00 : f32
    %114 = vector.broadcast %cst_61 : f32 to vector<8x128xf32>
    %115 = arith.addf %114, %113 : vector<8x128xf32>
    %116 = arith.divf %114, %115 : vector<8x128xf32>
    %117 = vector.extract_strided_slice %104 {offsets = [0, 256], sizes = [8, 128], strides = [1, 1]} : vector<8x512xf32> to vector<8x128xf32>
    %118 = math.tanh %117 : vector<8x128xf32>
    %119 = vector.extract_strided_slice %104 {offsets = [0, 384], sizes = [8, 128], strides = [1, 1]} : vector<8x512xf32> to vector<8x128xf32>
    %120 = arith.negf %119 : vector<8x128xf32>
    %121 = math.exp %120 : vector<8x128xf32>
    %cst_62 = arith.constant 1.000000e+00 : f32
    %122 = vector.broadcast %cst_62 : f32 to vector<8x128xf32>
    %123 = arith.addf %122, %121 : vector<8x128xf32>
    %124 = arith.divf %122, %123 : vector<8x128xf32>
    %125 = arith.mulf %116, %94 : vector<8x128xf32>
    %126 = arith.mulf %110, %118 : vector<8x128xf32>
    %127 = arith.addf %125, %126 : vector<8x128xf32>
    %128 = math.tanh %127 : vector<8x128xf32>
    %129 = arith.mulf %124, %128 : vector<8x128xf32>
    %c0_63 = arith.constant 0 : index
    %c0_64 = arith.constant 0 : index
    %130 = vector.load %arg10[%c0_63, %c0_64] : memref<8x128xf32, #tpu.memory_space<vmem>>, vector<8x128xf32>
    tpu.vector_store %arg10[%c0_63, %c0_64], %129 {strides = array<i32>} : memref<8x128xf32, #tpu.memory_space<vmem>>, vector<8x128xf32>,
    %c0_65 = arith.constant 0 : index
    %c0_66 = arith.constant 0 : index
    %131 = vector.load %arg11[%c0_65, %c0_66] : memref<8x128xf32, #tpu.memory_space<vmem>>, vector<8x128xf32>
    tpu.vector_store %arg11[%c0_65, %c0_66], %127 {strides = array<i32>} : memref<8x128xf32, #tpu.memory_space<vmem>>, vector<8x128xf32>,
    %132 = arith.truncf %129 : vector<8x128xf32> to vector<8x128xbf16>
    %133 = arith.index_cast %c2_i32 : i32 to index
    %c0_67 = arith.constant 0 : index
    %c0_68 = arith.constant 0 : index
    %134 = vector.load %arg7[%133, %c0_67, %c0_68] : memref<8x8x128xbf16, #tpu.memory_space<vmem>>, vector<1x8x128xbf16>
    %135 = vector.shape_cast %134 : vector<1x8x128xbf16> to vector<8x128xbf16>
    %136 = vector.shape_cast %132 : vector<8x128xbf16> to vector<1x8x128xbf16>
    tpu.vector_store %arg7[%133, %c0_67, %c0_68], %136 {strides = array<i32>} : memref<8x8x128xbf16, #tpu.memory_space<vmem>>, vector<1x8x128xbf16>,
    %c3_i32 = arith.constant 3 : i32
    %c0_69 = arith.constant 0 : index
    %c0_70 = arith.constant 0 : index
    %137 = vector.load %arg10[%c0_69, %c0_70] : memref<8x128xf32, #tpu.memory_space<vmem>>, vector<8x128xf32>
    %c0_71 = arith.constant 0 : index
    %c0_72 = arith.constant 0 : index
    %138 = vector.load %arg11[%c0_71, %c0_72] : memref<8x128xf32, #tpu.memory_space<vmem>>, vector<8x128xf32>
    %139 = arith.index_cast %c3_i32 : i32 to index
    %c0_73 = arith.constant 0 : index
    %c0_74 = arith.constant 0 : index
    %140 = vector.load %arg2[%139, %c0_73, %c0_74] : memref<8x8x128xbf16, #tpu.memory_space<vmem>>, vector<1x8x128xbf16>
    %141 = vector.shape_cast %140 : vector<1x8x128xbf16> to vector<8x128xbf16>
    %c0_75 = arith.constant 0 : index
    %c0_76 = arith.constant 0 : index
    %142 = vector.load %arg12[%c0_75, %c0_76] : memref<8x256xbf16, #tpu.memory_space<vmem>>, vector<8x128xbf16>
    tpu.vector_store %arg12[%c0_75, %c0_76], %141 {strides = array<i32>} : memref<8x256xbf16, #tpu.memory_space<vmem>>, vector<8x128xbf16>,
    %143 = arith.truncf %137 : vector<8x128xf32> to vector<8x128xbf16>
    %c0_77 = arith.constant 0 : index
    %c128_78 = arith.constant 128 : index
    %144 = vector.load %arg12[%c0_77, %c128_78] : memref<8x256xbf16, #tpu.memory_space<vmem>>, vector<8x128xbf16>
    tpu.vector_store %arg12[%c0_77, %c128_78], %143 {strides = array<i32>} : memref<8x256xbf16, #tpu.memory_space<vmem>>, vector<8x128xbf16>,
    %c0_79 = arith.constant 0 : index
    %c0_80 = arith.constant 0 : index
    %145 = vector.load %arg12[%c0_79, %c0_80] : memref<8x256xbf16, #tpu.memory_space<vmem>>, vector<8x256xbf16>
    %cst_81 = arith.constant dense<0.000000e+00> : vector<8x512xf32>
    %146 = tpu.matmul %145, %3, %cst_81 {dimension_numbers = #tpu.dot_dimension_numbers<[1], [0], [0], [1], [0, 0, 1, 1], [], []>} : vector<8x256xbf16>, vector<256x512xbf16>, vector<8x512xf32> -> vector<8x512xf32>
    %147 = vector.broadcast %4 : vector<1x512xf32> to vector<8x512xf32>
    %148 = arith.addf %146, %147 : vector<8x512xf32>
    %149 = vector.extract_strided_slice %148 {offsets = [0, 0], sizes = [8, 128], strides = [1, 1]} : vector<8x512xf32> to vector<8x128xf32>
    %150 = arith.negf %149 : vector<8x128xf32>
    %151 = math.exp %150 : vector<8x128xf32>
    %cst_82 = arith.constant 1.000000e+00 : f32
    %152 = vector.broadcast %cst_82 : f32 to vector<8x128xf32>
    %153 = arith.addf %152, %151 : vector<8x128xf32>
    %154 = arith.divf %152, %153 : vector<8x128xf32>
    %155 = vector.extract_strided_slice %148 {offsets = [0, 128], sizes = [8, 128], strides = [1, 1]} : vector<8x512xf32> to vector<8x128xf32>
    %156 = arith.negf %155 : vector<8x128xf32>
    %157 = math.exp %156 : vector<8x128xf32>
    %cst_83 = arith.constant 1.000000e+00 : f32
    %158 = vector.broadcast %cst_83 : f32 to vector<8x128xf32>
    %159 = arith.addf %158, %157 : vector<8x128xf32>
    %160 = arith.divf %158, %159 : vector<8x128xf32>
    %161 = vector.extract_strided_slice %148 {offsets = [0, 256], sizes = [8, 128], strides = [1, 1]} : vector<8x512xf32> to vector<8x128xf32>
    %162 = math.tanh %161 : vector<8x128xf32>
    %163 = vector.extract_strided_slice %148 {offsets = [0, 384], sizes = [8, 128], strides = [1, 1]} : vector<8x512xf32> to vector<8x128xf32>
    %164 = arith.negf %163 : vector<8x128xf32>
    %165 = math.exp %164 : vector<8x128xf32>
    %cst_84 = arith.constant 1.000000e+00 : f32
    %166 = vector.broadcast %cst_84 : f32 to vector<8x128xf32>
    %167 = arith.addf %166, %165 : vector<8x128xf32>
    %168 = arith.divf %166, %167 : vector<8x128xf32>
    %169 = arith.mulf %160, %138 : vector<8x128xf32>
    %170 = arith.mulf %154, %162 : vector<8x128xf32>
    %171 = arith.addf %169, %170 : vector<8x128xf32>
    %172 = math.tanh %171 : vector<8x128xf32>
    %173 = arith.mulf %168, %172 : vector<8x128xf32>
    %c0_85 = arith.constant 0 : index
    %c0_86 = arith.constant 0 : index
    %174 = vector.load %arg10[%c0_85, %c0_86] : memref<8x128xf32, #tpu.memory_space<vmem>>, vector<8x128xf32>
    tpu.vector_store %arg10[%c0_85, %c0_86], %173 {strides = array<i32>} : memref<8x128xf32, #tpu.memory_space<vmem>>, vector<8x128xf32>,
    %c0_87 = arith.constant 0 : index
    %c0_88 = arith.constant 0 : index
    %175 = vector.load %arg11[%c0_87, %c0_88] : memref<8x128xf32, #tpu.memory_space<vmem>>, vector<8x128xf32>
    tpu.vector_store %arg11[%c0_87, %c0_88], %171 {strides = array<i32>} : memref<8x128xf32, #tpu.memory_space<vmem>>, vector<8x128xf32>,
    %176 = arith.truncf %173 : vector<8x128xf32> to vector<8x128xbf16>
    %177 = arith.index_cast %c3_i32 : i32 to index
    %c0_89 = arith.constant 0 : index
    %c0_90 = arith.constant 0 : index
    %178 = vector.load %arg7[%177, %c0_89, %c0_90] : memref<8x8x128xbf16, #tpu.memory_space<vmem>>, vector<1x8x128xbf16>
    %179 = vector.shape_cast %178 : vector<1x8x128xbf16> to vector<8x128xbf16>
    %180 = vector.shape_cast %176 : vector<8x128xbf16> to vector<1x8x128xbf16>
    tpu.vector_store %arg7[%177, %c0_89, %c0_90], %180 {strides = array<i32>} : memref<8x8x128xbf16, #tpu.memory_space<vmem>>, vector<1x8x128xbf16>,
    %c4_i32 = arith.constant 4 : i32
    %c0_91 = arith.constant 0 : index
    %c0_92 = arith.constant 0 : index
    %181 = vector.load %arg10[%c0_91, %c0_92] : memref<8x128xf32, #tpu.memory_space<vmem>>, vector<8x128xf32>
    %c0_93 = arith.constant 0 : index
    %c0_94 = arith.constant 0 : index
    %182 = vector.load %arg11[%c0_93, %c0_94] : memref<8x128xf32, #tpu.memory_space<vmem>>, vector<8x128xf32>
    %183 = arith.index_cast %c4_i32 : i32 to index
    %c0_95 = arith.constant 0 : index
    %c0_96 = arith.constant 0 : index
    %184 = vector.load %arg2[%183, %c0_95, %c0_96] : memref<8x8x128xbf16, #tpu.memory_space<vmem>>, vector<1x8x128xbf16>
    %185 = vector.shape_cast %184 : vector<1x8x128xbf16> to vector<8x128xbf16>
    %c0_97 = arith.constant 0 : index
    %c0_98 = arith.constant 0 : index
    %186 = vector.load %arg12[%c0_97, %c0_98] : memref<8x256xbf16, #tpu.memory_space<vmem>>, vector<8x128xbf16>
    tpu.vector_store %arg12[%c0_97, %c0_98], %185 {strides = array<i32>} : memref<8x256xbf16, #tpu.memory_space<vmem>>, vector<8x128xbf16>,
    %187 = arith.truncf %181 : vector<8x128xf32> to vector<8x128xbf16>
    %c0_99 = arith.constant 0 : index
    %c128_100 = arith.constant 128 : index
    %188 = vector.load %arg12[%c0_99, %c128_100] : memref<8x256xbf16, #tpu.memory_space<vmem>>, vector<8x128xbf16>
    tpu.vector_store %arg12[%c0_99, %c128_100], %187 {strides = array<i32>} : memref<8x256xbf16, #tpu.memory_space<vmem>>, vector<8x128xbf16>,
    %c0_101 = arith.constant 0 : index
    %c0_102 = arith.constant 0 : index
    %189 = vector.load %arg12[%c0_101, %c0_102] : memref<8x256xbf16, #tpu.memory_space<vmem>>, vector<8x256xbf16>
    %cst_103 = arith.constant dense<0.000000e+00> : vector<8x512xf32>
    %190 = tpu.matmul %189, %3, %cst_103 {dimension_numbers = #tpu.dot_dimension_numbers<[1], [0], [0], [1], [0, 0, 1, 1], [], []>} : vector<8x256xbf16>, vector<256x512xbf16>, vector<8x512xf32> -> vector<8x512xf32>
    %191 = vector.broadcast %4 : vector<1x512xf32> to vector<8x512xf32>
    %192 = arith.addf %190, %191 : vector<8x512xf32>
    %193 = vector.extract_strided_slice %192 {offsets = [0, 0], sizes = [8, 128], strides = [1, 1]} : vector<8x512xf32> to vector<8x128xf32>
    %194 = arith.negf %193 : vector<8x128xf32>
    %195 = math.exp %194 : vector<8x128xf32>
    %cst_104 = arith.constant 1.000000e+00 : f32
    %196 = vector.broadcast %cst_104 : f32 to vector<8x128xf32>
    %197 = arith.addf %196, %195 : vector<8x128xf32>
    %198 = arith.divf %196, %197 : vector<8x128xf32>
    %199 = vector.extract_strided_slice %192 {offsets = [0, 128], sizes = [8, 128], strides = [1, 1]} : vector<8x512xf32> to vector<8x128xf32>
    %200 = arith.negf %199 : vector<8x128xf32>
    %201 = math.exp %200 : vector<8x128xf32>
    %cst_105 = arith.constant 1.000000e+00 : f32
    %202 = vector.broadcast %cst_105 : f32 to vector<8x128xf32>
    %203 = arith.addf %202, %201 : vector<8x128xf32>
    %204 = arith.divf %202, %203 : vector<8x128xf32>
    %205 = vector.extract_strided_slice %192 {offsets = [0, 256], sizes = [8, 128], strides = [1, 1]} : vector<8x512xf32> to vector<8x128xf32>
    %206 = math.tanh %205 : vector<8x128xf32>
    %207 = vector.extract_strided_slice %192 {offsets = [0, 384], sizes = [8, 128], strides = [1, 1]} : vector<8x512xf32> to vector<8x128xf32>
    %208 = arith.negf %207 : vector<8x128xf32>
    %209 = math.exp %208 : vector<8x128xf32>
    %cst_106 = arith.constant 1.000000e+00 : f32
    %210 = vector.broadcast %cst_106 : f32 to vector<8x128xf32>
    %211 = arith.addf %210, %209 : vector<8x128xf32>
    %212 = arith.divf %210, %211 : vector<8x128xf32>
    %213 = arith.mulf %204, %182 : vector<8x128xf32>
    %214 = arith.mulf %198, %206 : vector<8x128xf32>
    %215 = arith.addf %213, %214 : vector<8x128xf32>
    %216 = math.tanh %215 : vector<8x128xf32>
    %217 = arith.mulf %212, %216 : vector<8x128xf32>
    %c0_107 = arith.constant 0 : index
    %c0_108 = arith.constant 0 : index
    %218 = vector.load %arg10[%c0_107, %c0_108] : memref<8x128xf32, #tpu.memory_space<vmem>>, vector<8x128xf32>
    tpu.vector_store %arg10[%c0_107, %c0_108], %217 {strides = array<i32>} : memref<8x128xf32, #tpu.memory_space<vmem>>, vector<8x128xf32>,
    %c0_109 = arith.constant 0 : index
    %c0_110 = arith.constant 0 : index
    %219 = vector.load %arg11[%c0_109, %c0_110] : memref<8x128xf32, #tpu.memory_space<vmem>>, vector<8x128xf32>
    tpu.vector_store %arg11[%c0_109, %c0_110], %215 {strides = array<i32>} : memref<8x128xf32, #tpu.memory_space<vmem>>, vector<8x128xf32>,
    %220 = arith.truncf %217 : vector<8x128xf32> to vector<8x128xbf16>
    %221 = arith.index_cast %c4_i32 : i32 to index
    %c0_111 = arith.constant 0 : index
    %c0_112 = arith.constant 0 : index
    %222 = vector.load %arg7[%221, %c0_111, %c0_112] : memref<8x8x128xbf16, #tpu.memory_space<vmem>>, vector<1x8x128xbf16>
    %223 = vector.shape_cast %222 : vector<1x8x128xbf16> to vector<8x128xbf16>
    %224 = vector.shape_cast %220 : vector<8x128xbf16> to vector<1x8x128xbf16>
    tpu.vector_store %arg7[%221, %c0_111, %c0_112], %224 {strides = array<i32>} : memref<8x8x128xbf16, #tpu.memory_space<vmem>>, vector<1x8x128xbf16>,
    %c5_i32 = arith.constant 5 : i32
    %c0_113 = arith.constant 0 : index
    %c0_114 = arith.constant 0 : index
    %225 = vector.load %arg10[%c0_113, %c0_114] : memref<8x128xf32, #tpu.memory_space<vmem>>, vector<8x128xf32>
    %c0_115 = arith.constant 0 : index
    %c0_116 = arith.constant 0 : index
    %226 = vector.load %arg11[%c0_115, %c0_116] : memref<8x128xf32, #tpu.memory_space<vmem>>, vector<8x128xf32>
    %227 = arith.index_cast %c5_i32 : i32 to index
    %c0_117 = arith.constant 0 : index
    %c0_118 = arith.constant 0 : index
    %228 = vector.load %arg2[%227, %c0_117, %c0_118] : memref<8x8x128xbf16, #tpu.memory_space<vmem>>, vector<1x8x128xbf16>
    %229 = vector.shape_cast %228 : vector<1x8x128xbf16> to vector<8x128xbf16>
    %c0_119 = arith.constant 0 : index
    %c0_120 = arith.constant 0 : index
    %230 = vector.load %arg12[%c0_119, %c0_120] : memref<8x256xbf16, #tpu.memory_space<vmem>>, vector<8x128xbf16>
    tpu.vector_store %arg12[%c0_119, %c0_120], %229 {strides = array<i32>} : memref<8x256xbf16, #tpu.memory_space<vmem>>, vector<8x128xbf16>,
    %231 = arith.truncf %225 : vector<8x128xf32> to vector<8x128xbf16>
    %c0_121 = arith.constant 0 : index
    %c128_122 = arith.constant 128 : index
    %232 = vector.load %arg12[%c0_121, %c128_122] : memref<8x256xbf16, #tpu.memory_space<vmem>>, vector<8x128xbf16>
    tpu.vector_store %arg12[%c0_121, %c128_122], %231 {strides = array<i32>} : memref<8x256xbf16, #tpu.memory_space<vmem>>, vector<8x128xbf16>,
    %c0_123 = arith.constant 0 : index
    %c0_124 = arith.constant 0 : index
    %233 = vector.load %arg12[%c0_123, %c0_124] : memref<8x256xbf16, #tpu.memory_space<vmem>>, vector<8x256xbf16>
    %cst_125 = arith.constant dense<0.000000e+00> : vector<8x512xf32>
    %234 = tpu.matmul %233, %3, %cst_125 {dimension_numbers = #tpu.dot_dimension_numbers<[1], [0], [0], [1], [0, 0, 1, 1], [], []>} : vector<8x256xbf16>, vector<256x512xbf16>, vector<8x512xf32> -> vector<8x512xf32>
    %235 = vector.broadcast %4 : vector<1x512xf32> to vector<8x512xf32>
    %236 = arith.addf %234, %235 : vector<8x512xf32>
    %237 = vector.extract_strided_slice %236 {offsets = [0, 0], sizes = [8, 128], strides = [1, 1]} : vector<8x512xf32> to vector<8x128xf32>
    %238 = arith.negf %237 : vector<8x128xf32>
    %239 = math.exp %238 : vector<8x128xf32>
    %cst_126 = arith.constant 1.000000e+00 : f32
    %240 = vector.broadcast %cst_126 : f32 to vector<8x128xf32>
    %241 = arith.addf %240, %239 : vector<8x128xf32>
    %242 = arith.divf %240, %241 : vector<8x128xf32>
    %243 = vector.extract_strided_slice %236 {offsets = [0, 128], sizes = [8, 128], strides = [1, 1]} : vector<8x512xf32> to vector<8x128xf32>
    %244 = arith.negf %243 : vector<8x128xf32>
    %245 = math.exp %244 : vector<8x128xf32>
    %cst_127 = arith.constant 1.000000e+00 : f32
    %246 = vector.broadcast %cst_127 : f32 to vector<8x128xf32>
    %247 = arith.addf %246, %245 : vector<8x128xf32>
    %248 = arith.divf %246, %247 : vector<8x128xf32>
    %249 = vector.extract_strided_slice %236 {offsets = [0, 256], sizes = [8, 128], strides = [1, 1]} : vector<8x512xf32> to vector<8x128xf32>
    %250 = math.tanh %249 : vector<8x128xf32>
    %251 = vector.extract_strided_slice %236 {offsets = [0, 384], sizes = [8, 128], strides = [1, 1]} : vector<8x512xf32> to vector<8x128xf32>
    %252 = arith.negf %251 : vector<8x128xf32>
    %253 = math.exp %252 : vector<8x128xf32>
    %cst_128 = arith.constant 1.000000e+00 : f32
    %254 = vector.broadcast %cst_128 : f32 to vector<8x128xf32>
    %255 = arith.addf %254, %253 : vector<8x128xf32>
    %256 = arith.divf %254, %255 : vector<8x128xf32>
    %257 = arith.mulf %248, %226 : vector<8x128xf32>
    %258 = arith.mulf %242, %250 : vector<8x128xf32>
    %259 = arith.addf %257, %258 : vector<8x128xf32>
    %260 = math.tanh %259 : vector<8x128xf32>
    %261 = arith.mulf %256, %260 : vector<8x128xf32>
    %c0_129 = arith.constant 0 : index
    %c0_130 = arith.constant 0 : index
    %262 = vector.load %arg10[%c0_129, %c0_130] : memref<8x128xf32, #tpu.memory_space<vmem>>, vector<8x128xf32>
    tpu.vector_store %arg10[%c0_129, %c0_130], %261 {strides = array<i32>} : memref<8x128xf32, #tpu.memory_space<vmem>>, vector<8x128xf32>,
    %c0_131 = arith.constant 0 : index
    %c0_132 = arith.constant 0 : index
    %263 = vector.load %arg11[%c0_131, %c0_132] : memref<8x128xf32, #tpu.memory_space<vmem>>, vector<8x128xf32>
    tpu.vector_store %arg11[%c0_131, %c0_132], %259 {strides = array<i32>} : memref<8x128xf32, #tpu.memory_space<vmem>>, vector<8x128xf32>,
    %264 = arith.truncf %261 : vector<8x128xf32> to vector<8x128xbf16>
    %265 = arith.index_cast %c5_i32 : i32 to index
    %c0_133 = arith.constant 0 : index
    %c0_134 = arith.constant 0 : index
    %266 = vector.load %arg7[%265, %c0_133, %c0_134] : memref<8x8x128xbf16, #tpu.memory_space<vmem>>, vector<1x8x128xbf16>
    %267 = vector.shape_cast %266 : vector<1x8x128xbf16> to vector<8x128xbf16>
    %268 = vector.shape_cast %264 : vector<8x128xbf16> to vector<1x8x128xbf16>
    tpu.vector_store %arg7[%265, %c0_133, %c0_134], %268 {strides = array<i32>} : memref<8x8x128xbf16, #tpu.memory_space<vmem>>, vector<1x8x128xbf16>,
    %c6_i32 = arith.constant 6 : i32
    %c0_135 = arith.constant 0 : index
    %c0_136 = arith.constant 0 : index
    %269 = vector.load %arg10[%c0_135, %c0_136] : memref<8x128xf32, #tpu.memory_space<vmem>>, vector<8x128xf32>
    %c0_137 = arith.constant 0 : index
    %c0_138 = arith.constant 0 : index
    %270 = vector.load %arg11[%c0_137, %c0_138] : memref<8x128xf32, #tpu.memory_space<vmem>>, vector<8x128xf32>
    %271 = arith.index_cast %c6_i32 : i32 to index
    %c0_139 = arith.constant 0 : index
    %c0_140 = arith.constant 0 : index
    %272 = vector.load %arg2[%271, %c0_139, %c0_140] : memref<8x8x128xbf16, #tpu.memory_space<vmem>>, vector<1x8x128xbf16>
    %273 = vector.shape_cast %272 : vector<1x8x128xbf16> to vector<8x128xbf16>
    %c0_141 = arith.constant 0 : index
    %c0_142 = arith.constant 0 : index
    %274 = vector.load %arg12[%c0_141, %c0_142] : memref<8x256xbf16, #tpu.memory_space<vmem>>, vector<8x128xbf16>
    tpu.vector_store %arg12[%c0_141, %c0_142], %273 {strides = array<i32>} : memref<8x256xbf16, #tpu.memory_space<vmem>>, vector<8x128xbf16>,
    %275 = arith.truncf %269 : vector<8x128xf32> to vector<8x128xbf16>
    %c0_143 = arith.constant 0 : index
    %c128_144 = arith.constant 128 : index
    %276 = vector.load %arg12[%c0_143, %c128_144] : memref<8x256xbf16, #tpu.memory_space<vmem>>, vector<8x128xbf16>
    tpu.vector_store %arg12[%c0_143, %c128_144], %275 {strides = array<i32>} : memref<8x256xbf16, #tpu.memory_space<vmem>>, vector<8x128xbf16>,
    %c0_145 = arith.constant 0 : index
    %c0_146 = arith.constant 0 : index
    %277 = vector.load %arg12[%c0_145, %c0_146] : memref<8x256xbf16, #tpu.memory_space<vmem>>, vector<8x256xbf16>
    %cst_147 = arith.constant dense<0.000000e+00> : vector<8x512xf32>
    %278 = tpu.matmul %277, %3, %cst_147 {dimension_numbers = #tpu.dot_dimension_numbers<[1], [0], [0], [1], [0, 0, 1, 1], [], []>} : vector<8x256xbf16>, vector<256x512xbf16>, vector<8x512xf32> -> vector<8x512xf32>
    %279 = vector.broadcast %4 : vector<1x512xf32> to vector<8x512xf32>
    %280 = arith.addf %278, %279 : vector<8x512xf32>
    %281 = vector.extract_strided_slice %280 {offsets = [0, 0], sizes = [8, 128], strides = [1, 1]} : vector<8x512xf32> to vector<8x128xf32>
    %282 = arith.negf %281 : vector<8x128xf32>
    %283 = math.exp %282 : vector<8x128xf32>
    %cst_148 = arith.constant 1.000000e+00 : f32
    %284 = vector.broadcast %cst_148 : f32 to vector<8x128xf32>
    %285 = arith.addf %284, %283 : vector<8x128xf32>
    %286 = arith.divf %284, %285 : vector<8x128xf32>
    %287 = vector.extract_strided_slice %280 {offsets = [0, 128], sizes = [8, 128], strides = [1, 1]} : vector<8x512xf32> to vector<8x128xf32>
    %288 = arith.negf %287 : vector<8x128xf32>
    %289 = math.exp %288 : vector<8x128xf32>
    %cst_149 = arith.constant 1.000000e+00 : f32
    %290 = vector.broadcast %cst_149 : f32 to vector<8x128xf32>
    %291 = arith.addf %290, %289 : vector<8x128xf32>
    %292 = arith.divf %290, %291 : vector<8x128xf32>
    %293 = vector.extract_strided_slice %280 {offsets = [0, 256], sizes = [8, 128], strides = [1, 1]} : vector<8x512xf32> to vector<8x128xf32>
    %294 = math.tanh %293 : vector<8x128xf32>
    %295 = vector.extract_strided_slice %280 {offsets = [0, 384], sizes = [8, 128], strides = [1, 1]} : vector<8x512xf32> to vector<8x128xf32>
    %296 = arith.negf %295 : vector<8x128xf32>
    %297 = math.exp %296 : vector<8x128xf32>
    %cst_150 = arith.constant 1.000000e+00 : f32
    %298 = vector.broadcast %cst_150 : f32 to vector<8x128xf32>
    %299 = arith.addf %298, %297 : vector<8x128xf32>
    %300 = arith.divf %298, %299 : vector<8x128xf32>
    %301 = arith.mulf %292, %270 : vector<8x128xf32>
    %302 = arith.mulf %286, %294 : vector<8x128xf32>
    %303 = arith.addf %301, %302 : vector<8x128xf32>
    %304 = math.tanh %303 : vector<8x128xf32>
    %305 = arith.mulf %300, %304 : vector<8x128xf32>
    %c0_151 = arith.constant 0 : index
    %c0_152 = arith.constant 0 : index
    %306 = vector.load %arg10[%c0_151, %c0_152] : memref<8x128xf32, #tpu.memory_space<vmem>>, vector<8x128xf32>
    tpu.vector_store %arg10[%c0_151, %c0_152], %305 {strides = array<i32>} : memref<8x128xf32, #tpu.memory_space<vmem>>, vector<8x128xf32>,
    %c0_153 = arith.constant 0 : index
    %c0_154 = arith.constant 0 : index
    %307 = vector.load %arg11[%c0_153, %c0_154] : memref<8x128xf32, #tpu.memory_space<vmem>>, vector<8x128xf32>
    tpu.vector_store %arg11[%c0_153, %c0_154], %303 {strides = array<i32>} : memref<8x128xf32, #tpu.memory_space<vmem>>, vector<8x128xf32>,
    %308 = arith.truncf %305 : vector<8x128xf32> to vector<8x128xbf16>
    %309 = arith.index_cast %c6_i32 : i32 to index
    %c0_155 = arith.constant 0 : index
    %c0_156 = arith.constant 0 : index
    %310 = vector.load %arg7[%309, %c0_155, %c0_156] : memref<8x8x128xbf16, #tpu.memory_space<vmem>>, vector<1x8x128xbf16>
    %311 = vector.shape_cast %310 : vector<1x8x128xbf16> to vector<8x128xbf16>
    %312 = vector.shape_cast %308 : vector<8x128xbf16> to vector<1x8x128xbf16>
    tpu.vector_store %arg7[%309, %c0_155, %c0_156], %312 {strides = array<i32>} : memref<8x8x128xbf16, #tpu.memory_space<vmem>>, vector<1x8x128xbf16>,
    %c7_i32 = arith.constant 7 : i32
    %c0_157 = arith.constant 0 : index
    %c0_158 = arith.constant 0 : index
    %313 = vector.load %arg10[%c0_157, %c0_158] : memref<8x128xf32, #tpu.memory_space<vmem>>, vector<8x128xf32>
    %c0_159 = arith.constant 0 : index
    %c0_160 = arith.constant 0 : index
    %314 = vector.load %arg11[%c0_159, %c0_160] : memref<8x128xf32, #tpu.memory_space<vmem>>, vector<8x128xf32>
    %315 = arith.index_cast %c7_i32 : i32 to index
    %c0_161 = arith.constant 0 : index
    %c0_162 = arith.constant 0 : index
    %316 = vector.load %arg2[%315, %c0_161, %c0_162] : memref<8x8x128xbf16, #tpu.memory_space<vmem>>, vector<1x8x128xbf16>
    %317 = vector.shape_cast %316 : vector<1x8x128xbf16> to vector<8x128xbf16>
    %c0_163 = arith.constant 0 : index
    %c0_164 = arith.constant 0 : index
    %318 = vector.load %arg12[%c0_163, %c0_164] : memref<8x256xbf16, #tpu.memory_space<vmem>>, vector<8x128xbf16>
    tpu.vector_store %arg12[%c0_163, %c0_164], %317 {strides = array<i32>} : memref<8x256xbf16, #tpu.memory_space<vmem>>, vector<8x128xbf16>,
    %319 = arith.truncf %313 : vector<8x128xf32> to vector<8x128xbf16>
    %c0_165 = arith.constant 0 : index
    %c128_166 = arith.constant 128 : index
    %320 = vector.load %arg12[%c0_165, %c128_166] : memref<8x256xbf16, #tpu.memory_space<vmem>>, vector<8x128xbf16>
    tpu.vector_store %arg12[%c0_165, %c128_166], %319 {strides = array<i32>} : memref<8x256xbf16, #tpu.memory_space<vmem>>, vector<8x128xbf16>,
    %c0_167 = arith.constant 0 : index
    %c0_168 = arith.constant 0 : index
    %321 = vector.load %arg12[%c0_167, %c0_168] : memref<8x256xbf16, #tpu.memory_space<vmem>>, vector<8x256xbf16>
    %cst_169 = arith.constant dense<0.000000e+00> : vector<8x512xf32>
    %322 = tpu.matmul %321, %3, %cst_169 {dimension_numbers = #tpu.dot_dimension_numbers<[1], [0], [0], [1], [0, 0, 1, 1], [], []>} : vector<8x256xbf16>, vector<256x512xbf16>, vector<8x512xf32> -> vector<8x512xf32>
    %323 = vector.broadcast %4 : vector<1x512xf32> to vector<8x512xf32>
    %324 = arith.addf %322, %323 : vector<8x512xf32>
    %325 = vector.extract_strided_slice %324 {offsets = [0, 0], sizes = [8, 128], strides = [1, 1]} : vector<8x512xf32> to vector<8x128xf32>
    %326 = arith.negf %325 : vector<8x128xf32>
    %327 = math.exp %326 : vector<8x128xf32>
    %cst_170 = arith.constant 1.000000e+00 : f32
    %328 = vector.broadcast %cst_170 : f32 to vector<8x128xf32>
    %329 = arith.addf %328, %327 : vector<8x128xf32>
    %330 = arith.divf %328, %329 : vector<8x128xf32>
    %331 = vector.extract_strided_slice %324 {offsets = [0, 128], sizes = [8, 128], strides = [1, 1]} : vector<8x512xf32> to vector<8x128xf32>
    %332 = arith.negf %331 : vector<8x128xf32>
    %333 = math.exp %332 : vector<8x128xf32>
    %cst_171 = arith.constant 1.000000e+00 : f32
    %334 = vector.broadcast %cst_171 : f32 to vector<8x128xf32>
    %335 = arith.addf %334, %333 : vector<8x128xf32>
    %336 = arith.divf %334, %335 : vector<8x128xf32>
    %337 = vector.extract_strided_slice %324 {offsets = [0, 256], sizes = [8, 128], strides = [1, 1]} : vector<8x512xf32> to vector<8x128xf32>
    %338 = math.tanh %337 : vector<8x128xf32>
    %339 = vector.extract_strided_slice %324 {offsets = [0, 384], sizes = [8, 128], strides = [1, 1]} : vector<8x512xf32> to vector<8x128xf32>
    %340 = arith.negf %339 : vector<8x128xf32>
    %341 = math.exp %340 : vector<8x128xf32>
    %cst_172 = arith.constant 1.000000e+00 : f32
    %342 = vector.broadcast %cst_172 : f32 to vector<8x128xf32>
    %343 = arith.addf %342, %341 : vector<8x128xf32>
    %344 = arith.divf %342, %343 : vector<8x128xf32>
    %345 = arith.mulf %336, %314 : vector<8x128xf32>
    %346 = arith.mulf %330, %338 : vector<8x128xf32>
    %347 = arith.addf %345, %346 : vector<8x128xf32>
    %348 = math.tanh %347 : vector<8x128xf32>
    %349 = arith.mulf %344, %348 : vector<8x128xf32>
    %c0_173 = arith.constant 0 : index
    %c0_174 = arith.constant 0 : index
    %350 = vector.load %arg10[%c0_173, %c0_174] : memref<8x128xf32, #tpu.memory_space<vmem>>, vector<8x128xf32>
    tpu.vector_store %arg10[%c0_173, %c0_174], %349 {strides = array<i32>} : memref<8x128xf32, #tpu.memory_space<vmem>>, vector<8x128xf32>,
    %c0_175 = arith.constant 0 : index
    %c0_176 = arith.constant 0 : index
    %351 = vector.load %arg11[%c0_175, %c0_176] : memref<8x128xf32, #tpu.memory_space<vmem>>, vector<8x128xf32>
    tpu.vector_store %arg11[%c0_175, %c0_176], %347 {strides = array<i32>} : memref<8x128xf32, #tpu.memory_space<vmem>>, vector<8x128xf32>,
    %352 = arith.truncf %349 : vector<8x128xf32> to vector<8x128xbf16>
    %353 = arith.index_cast %c7_i32 : i32 to index
    %c0_177 = arith.constant 0 : index
    %c0_178 = arith.constant 0 : index
    %354 = vector.load %arg7[%353, %c0_177, %c0_178] : memref<8x8x128xbf16, #tpu.memory_space<vmem>>, vector<1x8x128xbf16>
    %355 = vector.shape_cast %354 : vector<1x8x128xbf16> to vector<8x128xbf16>
    %356 = vector.shape_cast %352 : vector<8x128xbf16> to vector<1x8x128xbf16>
    tpu.vector_store %arg7[%353, %c0_177, %c0_178], %356 {strides = array<i32>} : memref<8x8x128xbf16, #tpu.memory_space<vmem>>, vector<1x8x128xbf16>,
    %c8_i32 = arith.constant 8 : i32
    %c0_179 = arith.constant 0 : index
    %c0_180 = arith.constant 0 : index
    %357 = vector.load %arg10[%c0_179, %c0_180] : memref<8x128xf32, #tpu.memory_space<vmem>>, vector<8x128xf32>
    %c0_181 = arith.constant 0 : index
    %c0_182 = arith.constant 0 : index
    %358 = vector.load %arg8[%c0_181, %c0_182] : memref<8x128xf32, #tpu.memory_space<vmem>>, vector<8x128xf32>
    tpu.vector_store %arg8[%c0_181, %c0_182], %357 {strides = array<i32>} : memref<8x128xf32, #tpu.memory_space<vmem>>, vector<8x128xf32>,
    %c0_183 = arith.constant 0 : index
    %c0_184 = arith.constant 0 : index
    %359 = vector.load %arg11[%c0_183, %c0_184] : memref<8x128xf32, #tpu.memory_space<vmem>>, vector<8x128xf32>
    %c0_185 = arith.constant 0 : index
    %c0_186 = arith.constant 0 : index
    %360 = vector.load %arg9[%c0_185, %c0_186] : memref<8x128xf32, #tpu.memory_space<vmem>>, vector<8x128xf32>
    tpu.vector_store %arg9[%c0_185, %c0_186], %359 {strides = array<i32>} : memref<8x128xf32, #tpu.memory_space<vmem>>, vector<8x128xf32>,
    return
  }
  func.func @transform_0(%arg0: i32, %arg1: i32) -> (i32, i32, i32) {
    %c0_i32 = arith.constant 0 : i32
    %c0_i32_0 = arith.constant 0 : i32
    return %arg1, %arg0, %c0_i32 : i32, i32, i32
  }
  func.func @transform_1(%arg0: i32, %arg1: i32) -> (i32, i32) {
    %c0_i32 = arith.constant 0 : i32
    %c0_i32_0 = arith.constant 0 : i32
    %c0_i32_1 = arith.constant 0 : i32
    return %c0_i32, %c0_i32_0 : i32, i32
  }
  func.func @transform_2(%arg0: i32, %arg1: i32) -> (i32, i32) {
    %c0_i32 = arith.constant 0 : i32
    %c0_i32_0 = arith.constant 0 : i32
    %c0_i32_1 = arith.constant 0 : i32
    return %c0_i32, %c0_i32_0 : i32, i32
  }
  func.func @transform_3(%arg0: i32, %arg1: i32) -> (i32, i32) {
    %c0_i32 = arith.constant 0 : i32
    %c0_i32_0 = arith.constant 0 : i32
    return %arg0, %c0_i32 : i32, i32
  }
  func.func @transform_4(%arg0: i32, %arg1: i32) -> (i32, i32) {
    %c0_i32 = arith.constant 0 : i32
    %c0_i32_0 = arith.constant 0 : i32
    return %arg0, %c0_i32 : i32, i32
  }
  func.func @transform_5(%arg0: i32, %arg1: i32) -> (i32, i32, i32) {
    %c0_i32 = arith.constant 0 : i32
    %c0_i32_0 = arith.constant 0 : i32
    return %arg1, %arg0, %c0_i32 : i32, i32, i32
  }
  func.func @transform_6(%arg0: i32, %arg1: i32) -> (i32, i32) {
    %c0_i32 = arith.constant 0 : i32
    %c0_i32_0 = arith.constant 0 : i32
    return %arg0, %c0_i32 : i32, i32
  }
  func.func @transform_7(%arg0: i32, %arg1: i32) -> (i32, i32) {
    %c0_i32 = arith.constant 0 : i32
    %c0_i32_0 = arith.constant 0 : i32
    return %arg0, %c0_i32 : i32, i32
  }
}

</mosaic_0001>

<llo_original>
// kernel: tpu_custom_call.1
$region0: #{tpu_custom_call.1}
  #allocation0 [shape = 'u32[]', space=smem, size = 0x4, offset = 0x4, fixed_abs, tag = 'smem constant byte address 0x4 - core index']
  #allocation1 [shape = 'u32[144,128]{1,0:T(1,128)}', space=vmem, size = 0x12000, scoped, tag = 'internal scratch']
  #allocation2 [shape = 'f32[8,128]{1,0:T(8,128)}', space=vmem, size = 0x1000, scoped, tag = 'scratch operand']
  #allocation3 [shape = 'f32[8,128]{1,0:T(8,128)}', space=vmem, size = 0x1000, scoped, tag = 'scratch operand']
  #allocation4 [shape = 'bf16[8,256]{1,0:T(8,128)(2,1)}', space=vmem, size = 0x1000, scoped, tag = 'scratch operand']
  %s0 = inlined_call_operand.hbm [shape: bf16[8,8,128], index: 0, kind: input, shape index: {}]
  %s1 = inlined_call_operand.hbm [shape: bf16[256,512], index: 1, kind: input, shape index: {}]
  %s2 = inlined_call_operand.hbm [shape: f32[1,512], index: 2, kind: input, shape index: {}]
  %s3 = inlined_call_operand.hbm [shape: f32[8,128], index: 3, kind: input, shape index: {}]
  %s4 = inlined_call_operand.hbm [shape: f32[8,128], index: 4, kind: input, shape index: {}]
  %s5 = inlined_call_operand.hbm [shape: bf16[8,8,128], index: 5, kind: output, shape index: {0}]
  %s6 = inlined_call_operand.hbm [shape: f32[8,128], index: 6, kind: output, shape index: {1}]
  %s7 = inlined_call_operand.hbm [shape: f32[8,128], index: 7, kind: output, shape index: {2}]
  %8 = xla_tuple %s5, %s6, %s7
  %s9 = sld [smem:[#allocation0]]
  $region70: #{tpu_custom_call.1} parent=0
    _
  %s11 = ssub.s32 1, %s9
  %s12 = scalar_select 0, %s11, %s9
  $region1: #{tpu_custom_call.1} parent=0
    #allocation5 [shape = 'u8[16384]{0}', space=vmem, size = 0x4000, scoped, tag = 'input window, operand 0, single buffered']
    #allocation6 [shape = 's32[1]{0}', space=sflag, size = 0x4, scoped, tag = 'scoped memory for tpu_custom_call.1']
    #allocation7 [shape = 's32[1]{0}', space=sflag, size = 0x4, scoped, tag = 'scoped memory for tpu_custom_call.1']
    #allocation8 [shape = 'u8[262144]{0}', space=vmem, size = 0x40000, scoped, tag = 'input window, operand 1, single buffered']
    #allocation9 [shape = 's32[1]{0}', space=sflag, size = 0x4, scoped, tag = 'scoped memory for tpu_custom_call.1']
    #allocation10 [shape = 'u8[2048]{0}', space=vmem, size = 0x800, scoped, tag = 'input window, operand 2, single buffered']
    #allocation11 [shape = 'u8[4096]{0}', space=vmem, size = 0x1000, scoped, tag = 'input window, operand 3, single buffered']
    #allocation12 [shape = 's32[1]{0}', space=sflag, size = 0x4, scoped, tag = 'scoped memory for tpu_custom_call.1']
    #allocation13 [shape = 'u8[4096]{0}', space=vmem, size = 0x1000, scoped, tag = 'input window, operand 4, single buffered']
    #allocation14 [shape = 'u8[16384]{0}', space=vmem, size = 0x4000, scoped, tag = 'output window, operand 0, single buffered']
    #allocation15 [shape = 'u8[4096]{0}', space=vmem, size = 0x1000, scoped, tag = 'output window, operand 1, single buffered']
    #allocation16 [shape = 's32[1]{0}', space=sflag, size = 0x4, scoped, tag = 'scoped memory for tpu_custom_call.1']
    #allocation17 [shape = 'u8[4096]{0}', space=vmem, size = 0x1000, scoped, tag = 'output window, operand 2, single buffered']
    %13 = vsyncpa [#allocation6], 0
    %14 = vsyncpa [#allocation9], 0
    %15 = vsyncpa [#allocation12], 0
    %16 = vsyncpa [#allocation7], 0
    %17 = vsyncpa [#allocation16], 0
    // Predicated region
    $region2: #{tpu_custom_call.1} parent=1 // pred_check
      _
    $region3: #{tpu_custom_call.1} parent=1 // pred_check_branch
      %19 = sbr.rel (0) target = $region5
    $region4: #{tpu_custom_call.1} parent=1 // pred_region
      %s21 = ssub.s32 512, 512
      %22 = vsyncadd [#allocation6], %s21
      %s23 = sshll.u32 [#allocation5], 4
      %s24 = int_to_ptr.vmem [resolvable:$true] %s23
      %29 = dma.hbm_to_vmem [thread:$0]  %s0, 512, %s24, [#allocation6], 64, 64, 4
    $region5: #{tpu_custom_call.1} parent=1 // pred_fallthru
      _
    // Predicated region
    $region6: #{tpu_custom_call.1} parent=1 // pred_check
      _
    $region7: #{tpu_custom_call.1} parent=1 // pred_check_branch
      %31 = sbr.rel (0) target = $region9
    $region8: #{tpu_custom_call.1} parent=1 // pred_region
      %s33 = ssub.s32 8192, 8192
      %34 = vsyncadd [#allocation9], %s33
      %s35 = sshll.u32 [#allocation8], 4
      %s36 = int_to_ptr.vmem [resolvable:$true] %s35
      %41 = dma.hbm_to_vmem [thread:$0]  %s1, 8192, %s36, [#allocation9], 256, 256, 16
    $region9: #{tpu_custom_call.1} parent=1 // pred_fallthru
      _
    // Predicated region
    $region10: #{tpu_custom_call.1} parent=1 // pred_check
      _
    $region11: #{tpu_custom_call.1} parent=1 // pred_check_branch
      %43 = sbr.rel (0) target = $region13
    $region12: #{tpu_custom_call.1} parent=1 // pred_region
      %s45 = ssub.s32 64, 64
      %46 = vsyncadd [#allocation9], %s45
      %s48 = sshll.u32 [#allocation10], 4
      %s49 = int_to_ptr.vmem [resolvable:$true] %s48
      %51 = dma.hbm_to_vmem [thread:$0]  %s2, 64, %s49, [#allocation9]
    $region13: #{tpu_custom_call.1} parent=1 // pred_fallthru
      _
    // Predicated region
    $region14: #{tpu_custom_call.1} parent=1 // pred_check
      _
    $region15: #{tpu_custom_call.1} parent=1 // pred_check_branch
      %53 = sbr.rel (0) target = $region17
    $region16: #{tpu_custom_call.1} parent=1 // pred_region
      %s55 = ssub.s32 128, 128
      %56 = vsyncadd [#allocation12], %s55
      %s58 = sshll.u32 [#allocation11], 4
      %s59 = int_to_ptr.vmem [resolvable:$true] %s58
      %61 = dma.hbm_to_vmem [thread:$0]  %s3, 128, %s59, [#allocation12]
    $region17: #{tpu_custom_call.1} parent=1 // pred_fallthru
      _
    // Predicated region
    $region18: #{tpu_custom_call.1} parent=1 // pred_check
      _
    $region19: #{tpu_custom_call.1} parent=1 // pred_check_branch
      %63 = sbr.rel (0) target = $region21
    $region20: #{tpu_custom_call.1} parent=1 // pred_region
      %s65 = ssub.s32 128, 128
      %66 = vsyncadd [#allocation12], %s65
      %s68 = sshll.u32 [#allocation13], 4
      %s69 = int_to_ptr.vmem [resolvable:$true] %s68
      %71 = dma.hbm_to_vmem [thread:$0]  %s4, 128, %s69, [#allocation12]
    $region21: #{tpu_custom_call.1} parent=1 // pred_fallthru
      _
    // Predicated region
    $region22: #{tpu_custom_call.1} parent=1 // pred_check
      _
    $region23: #{tpu_custom_call.1} parent=1 // pred_check_branch
      %73 = sbr.rel (0) target = $region25
    $region24: #{tpu_custom_call.1} parent=1 // pred_region
      %74 = dma.done [#allocation6], 512
    $region25: #{tpu_custom_call.1} parent=1 // pred_fallthru
      _
    // Predicated region
    $region26: #{tpu_custom_call.1} parent=1 // pred_check
      _
    $region27: #{tpu_custom_call.1} parent=1 // pred_check_branch
      %76 = sbr.rel (0) target = $region29
    $region28: #{tpu_custom_call.1} parent=1 // pred_region
      %77 = dma.done [#allocation9], 8192
    $region29: #{tpu_custom_call.1} parent=1 // pred_fallthru
      _
    // Predicated region
    $region30: #{tpu_custom_call.1} parent=1 // pred_check
      _
    $region31: #{tpu_custom_call.1} parent=1 // pred_check_branch
      %79 = sbr.rel (0) target = $region33
    $region32: #{tpu_custom_call.1} parent=1 // pred_region
      %80 = dma.done [#allocation9], 64
    $region33: #{tpu_custom_call.1} parent=1 // pred_fallthru
      _
    // Predicated region
    $region34: #{tpu_custom_call.1} parent=1 // pred_check
      _
    $region35: #{tpu_custom_call.1} parent=1 // pred_check_branch
      %82 = sbr.rel (0) target = $region37
    $region36: #{tpu_custom_call.1} parent=1 // pred_region
      %83 = dma.done [#allocation12], 128
    $region37: #{tpu_custom_call.1} parent=1 // pred_fallthru
      _
    // Predicated region
    $region38: #{tpu_custom_call.1} parent=1 // pred_check
      _
    $region39: #{tpu_custom_call.1} parent=1 // pred_check_branch
      %85 = sbr.rel (0) target = $region41
    $region40: #{tpu_custom_call.1} parent=1 // pred_region
      %86 = dma.done [#allocation12], 128
    $region41: #{tpu_custom_call.1} parent=1 // pred_fallthru
      _
    %p87 = scmp.eq.s32.totalorder 0, 0
    // Predicated region
    $region42: #{tpu_custom_call.1} parent=1 // pred_check
      %p88 = pneg %p87
    $region43: #{tpu_custom_call.1} parent=1 // pred_check_branch
      %90 = sbr.rel (%p88) target = $region45
    $region44: #{tpu_custom_call.1} parent=1 // pred_region
      %v91 = vld [vmem:[#allocation11] sm:$0xff]
      %92 = vst [vmem:[#allocation2] sm:$0xff] %v91
      %v93 = vld [vmem:[#allocation13] sm:$0xff]
      %94 = vst [vmem:[#allocation3] sm:$0xff] %v93
    $region45: #{tpu_custom_call.1} parent=1 // pred_fallthru
      _
    %v95 = vld [vmem:[#allocation8] sm:$0xff]
    %v96 = vld [vmem:[#allocation8 + $0x8] sm:$0xff]
    %v97 = vld [vmem:[#allocation8 + $0x10] sm:$0xff]
    %v98 = vld [vmem:[#allocation8 + $0x18] sm:$0xff]
    %v99 = vld [vmem:[#allocation8 + $0x20] sm:$0xff]
    %v100 = vld [vmem:[#allocation8 + $0x28] sm:$0xff]
    %v101 = vld [vmem:[#allocation8 + $0x30] sm:$0xff]
    %v102 = vld [vmem:[#allocation8 + $0x38] sm:$0xff]
    %v103 = vld [vmem:[#allocation8 + $0x40] sm:$0xff]
    %v104 = vld [vmem:[#allocation8 + $0x48] sm:$0xff]
    %v105 = vld [vmem:[#allocation8 + $0x50] sm:$0xff]
    %v106 = vld [vmem:[#allocation8 + $0x58] sm:$0xff]
    %v107 = vld [vmem:[#allocation8 + $0x60] sm:$0xff]
    %v108 = vld [vmem:[#allocation8 + $0x68] sm:$0xff]
    %v109 = vld [vmem:[#allocation8 + $0x70] sm:$0xff]
    %v110 = vld [vmem:[#allocation8 + $0x78] sm:$0xff]
    %v111 = vld [vmem:[#allocation8 + $0x80] sm:$0xff]
    %v112 = vld [vmem:[#allocation8 + $0x88] sm:$0xff]
    %v113 = vld [vmem:[#allocation8 + $0x90] sm:$0xff]
    %v114 = vld [vmem:[#allocation8 + $0x98] sm:$0xff]
    %v115 = vld [vmem:[#allocation8 + $0xa0] sm:$0xff]
    %v116 = vld [vmem:[#allocation8 + $0xa8] sm:$0xff]
    %v117 = vld [vmem:[#allocation8 + $0xb0] sm:$0xff]
    %v118 = vld [vmem:[#allocation8 + $0xb8] sm:$0xff]
    %v119 = vld [vmem:[#allocation8 + $0xc0] sm:$0xff]
    %v120 = vld [vmem:[#allocation8 + $0xc8] sm:$0xff]
    %v121 = vld [vmem:[#allocation8 + $0xd0] sm:$0xff]
    %v122 = vld [vmem:[#allocation8 + $0xd8] sm:$0xff]
    %v123 = vld [vmem:[#allocation8 + $0xe0] sm:$0xff]
    %v124 = vld [vmem:[#allocation8 + $0xe8] sm:$0xff]
    %v125 = vld [vmem:[#allocation8 + $0xf0] sm:$0xff]
    %v126 = vld [vmem:[#allocation8 + $0xf8] sm:$0xff]
    %v127 = vld [vmem:[#allocation8 + $0x100] sm:$0xff]
    %v128 = vld [vmem:[#allocation8 + $0x108] sm:$0xff]
    %v129 = vld [vmem:[#allocation8 + $0x110] sm:$0xff]
    %v130 = vld [vmem:[#allocation8 + $0x118] sm:$0xff]
    %v131 = vld [vmem:[#allocation8 + $0x120] sm:$0xff]
    %v132 = vld [vmem:[#allocation8 + $0x128] sm:$0xff]
    %v133 = vld [vmem:[#allocation8 + $0x130] sm:$0xff]
    %v134 = vld [vmem:[#allocation8 + $0x138] sm:$0xff]
    %v135 = vld [vmem:[#allocation8 + $0x140] sm:$0xff]
    %v136 = vld [vmem:[#allocation8 + $0x148] sm:$0xff]
    %v137 = vld [vmem:[#allocation8 + $0x150] sm:$0xff]
    %v138 = vld [vmem:[#allocation8 + $0x158] sm:$0xff]
    %v139 = vld [vmem:[#allocation8 + $0x160] sm:$0xff]
    %v140 = vld [vmem:[#allocation8 + $0x168] sm:$0xff]
    %v141 = vld [vmem:[#allocation8 + $0x170] sm:$0xff]
    %v142 = vld [vmem:[#allocation8 + $0x178] sm:$0xff]
    %v143 = vld [vmem:[#allocation8 + $0x180] sm:$0xff]
    %v144 = vld [vmem:[#allocation8 + $0x188] sm:$0xff]
    %v145 = vld [vmem:[#allocation8 + $0x190] sm:$0xff]
    %v146 = vld [vmem:[#allocation8 + $0x198] sm:$0xff]
    %v147 = vld [vmem:[#allocation8 + $0x1a0] sm:$0xff]
    %v148 = vld [vmem:[#allocation8 + $0x1a8] sm:$0xff]
    %v149 = vld [vmem:[#allocation8 + $0x1b0] sm:$0xff]
    %v150 = vld [vmem:[#allocation8 + $0x1b8] sm:$0xff]
    %v151 = vld [vmem:[#allocation8 + $0x1c0] sm:$0xff]
    %v152 = vld [vmem:[#allocation8 + $0x1c8] sm:$0xff]
    %v153 = vld [vmem:[#allocation8 + $0x1d0] sm:$0xff]
    %v154 = vld [vmem:[#allocation8 + $0x1d8] sm:$0xff]
    %v155 = vld [vmem:[#allocation8 + $0x1e0] sm:$0xff]
    %v156 = vld [vmem:[#allocation8 + $0x1e8] sm:$0xff]
    %v157 = vld [vmem:[#allocation8 + $0x1f0] sm:$0xff]
    %v158 = vld [vmem:[#allocation8 + $0x1f8] sm:$0xff]
    %v159 = vld [vmem:[#allocation10] sm:$0xf]
    %v160 = vld [vmem:[#allocation2] sm:$0xff]
    %v161 = vld [vmem:[#allocation3] sm:$0xff]
    %v162 = vld [vmem:[#allocation5] sm:$0xf]
    %163 = vst [vmem:[#allocation4] sm:$0xf] %v162
    %v164 = vpack.c.bf16 %v160, %v160
    %165 = vst [vmem:[#allocation4 + $0x4] sm:$0xf] %v164
    %v166 = vld [vmem:[#allocation4] sm:$0xff]
    %v168 = vlaneseq
    %v169 = vshrl.u32 %v168, 7
    %v170 = vsub.s32 0, %v169
    %v171 = vrot.slane %v159, %v170
    %v172 = vlaneseq
    %v173 = vshrl.u32 %v172, 7
    %v174 = vsub.s32 1, %v173
    %v175 = vrot.slane %v159, %v174
    %v176 = vlaneseq
    %v177 = vshrl.u32 %v176, 7
    %v178 = vsub.s32 2, %v177
    %v179 = vrot.slane %v159, %v178
    %v180 = vlaneseq
    %v181 = vshrl.u32 %v180, 7
    %v182 = vsub.s32 3, %v181
    %v183 = vrot.slane %v159, %v182
    %v189 = vunpack.c.l.b16 %v166
    %v190 = vunpack.c.h.b16 %v166
    %v191 = vpack.c.b16 %v189, %v189
    %v192 = vpack.c.b16 %v190, %v190
    %v259 = vunpack.c.l.b16 %v95
    %v260 = vunpack.c.h.b16 %v95
    %v261 = vunpack.c.l.b16 %v96
    %v262 = vunpack.c.h.b16 %v96
    %v263 = vunpack.c.l.b16 %v97
    %v264 = vunpack.c.h.b16 %v97
    %v265 = vunpack.c.l.b16 %v98
    %v266 = vunpack.c.h.b16 %v98
    %v267 = vunpack.c.l.b16 %v99
    %v268 = vunpack.c.h.b16 %v99
    %v269 = vunpack.c.l.b16 %v100
    %v270 = vunpack.c.h.b16 %v100
    %v271 = vunpack.c.l.b16 %v101
    %v272 = vunpack.c.h.b16 %v101
    %v273 = vunpack.c.l.b16 %v102
    %v274 = vunpack.c.h.b16 %v102
    %v275 = vunpack.c.l.b16 %v103
    %v276 = vunpack.c.h.b16 %v103
    %v277 = vunpack.c.l.b16 %v104
    %v278 = vunpack.c.h.b16 %v104
    %v279 = vunpack.c.l.b16 %v105
    %v280 = vunpack.c.h.b16 %v105
    %v281 = vunpack.c.l.b16 %v106
    %v282 = vunpack.c.h.b16 %v106
    %v283 = vunpack.c.l.b16 %v107
    %v284 = vunpack.c.h.b16 %v107
    %v285 = vunpack.c.l.b16 %v108
    %v286 = vunpack.c.h.b16 %v108
    %v287 = vunpack.c.l.b16 %v109
    %v288 = vunpack.c.h.b16 %v109
    %v289 = vunpack.c.l.b16 %v110
    %v290 = vunpack.c.h.b16 %v110
    %v291 = vunpack.c.l.b16 %v111
    %v292 = vunpack.c.h.b16 %v111
    %v293 = vunpack.c.l.b16 %v112
    %v294 = vunpack.c.h.b16 %v112
    %v295 = vunpack.c.l.b16 %v113
    %v296 = vunpack.c.h.b16 %v113
    %v297 = vunpack.c.l.b16 %v114
    %v298 = vunpack.c.h.b16 %v114
    %v299 = vunpack.c.l.b16 %v115
    %v300 = vunpack.c.h.b16 %v115
    %v301 = vunpack.c.l.b16 %v116
    %v302 = vunpack.c.h.b16 %v116
    %v303 = vunpack.c.l.b16 %v117
    %v304 = vunpack.c.h.b16 %v117
    %v305 = vunpack.c.l.b16 %v118
    %v306 = vunpack.c.h.b16 %v118
    %v307 = vunpack.c.l.b16 %v119
    %v308 = vunpack.c.h.b16 %v119
    %v309 = vunpack.c.l.b16 %v120
    %v310 = vunpack.c.h.b16 %v120
    %v311 = vunpack.c.l.b16 %v121
    %v312 = vunpack.c.h.b16 %v121
    %v313 = vunpack.c.l.b16 %v122
    %v314 = vunpack.c.h.b16 %v122
    %v315 = vunpack.c.l.b16 %v123
    %v316 = vunpack.c.h.b16 %v123
    %v317 = vunpack.c.l.b16 %v124
    %v318 = vunpack.c.h.b16 %v124
    %v319 = vunpack.c.l.b16 %v125
    %v320 = vunpack.c.h.b16 %v125
    %v321 = vunpack.c.l.b16 %v126
    %v322 = vunpack.c.h.b16 %v126
    %v323 = vunpack.c.l.b16 %v127
    %v324 = vunpack.c.h.b16 %v127
    %v325 = vunpack.c.l.b16 %v128
    %v326 = vunpack.c.h.b16 %v128
    %v327 = vunpack.c.l.b16 %v129
    %v328 = vunpack.c.h.b16 %v129
    %v329 = vunpack.c.l.b16 %v130
    %v330 = vunpack.c.h.b16 %v130
    %v331 = vunpack.c.l.b16 %v131
    %v332 = vunpack.c.h.b16 %v131
    %v333 = vunpack.c.l.b16 %v132
    %v334 = vunpack.c.h.b16 %v132
    %v335 = vunpack.c.l.b16 %v133
    %v336 = vunpack.c.h.b16 %v133
    %v337 = vunpack.c.l.b16 %v134
    %v338 = vunpack.c.h.b16 %v134
    %v339 = vunpack.c.l.b16 %v135
    %v340 = vunpack.c.h.b16 %v135
    %v341 = vunpack.c.l.b16 %v136
    %v342 = vunpack.c.h.b16 %v136
    %v343 = vunpack.c.l.b16 %v137
    %v344 = vunpack.c.h.b16 %v137
    %v345 = vunpack.c.l.b16 %v138
    %v346 = vunpack.c.h.b16 %v138
    %v347 = vunpack.c.l.b16 %v139
    %v348 = vunpack.c.h.b16 %v139
    %v349 = vunpack.c.l.b16 %v140
    %v350 = vunpack.c.h.b16 %v140
    %v351 = vunpack.c.l.b16 %v141
    %v352 = vunpack.c.h.b16 %v141
    %v353 = vunpack.c.l.b16 %v142
    %v354 = vunpack.c.h.b16 %v142
    %v355 = vunpack.c.l.b16 %v143
    %v356 = vunpack.c.h.b16 %v143
    %v357 = vunpack.c.l.b16 %v144
    %v358 = vunpack.c.h.b16 %v144
    %v359 = vunpack.c.l.b16 %v145
    %v360 = vunpack.c.h.b16 %v145
    %v361 = vunpack.c.l.b16 %v146
    %v362 = vunpack.c.h.b16 %v146
    %v363 = vunpack.c.l.b16 %v147
    %v364 = vunpack.c.h.b16 %v147
    %v365 = vunpack.c.l.b16 %v148
    %v366 = vunpack.c.h.b16 %v148
    %v367 = vunpack.c.l.b16 %v149
    %v368 = vunpack.c.h.b16 %v149
    %v369 = vunpack.c.l.b16 %v150
    %v370 = vunpack.c.h.b16 %v150
    %v371 = vunpack.c.l.b16 %v151
    %v372 = vunpack.c.h.b16 %v151
    %v373 = vunpack.c.l.b16 %v152
    %v374 = vunpack.c.h.b16 %v152
    %v375 = vunpack.c.l.b16 %v153
    %v376 = vunpack.c.h.b16 %v153
    %v377 = vunpack.c.l.b16 %v154
    %v378 = vunpack.c.h.b16 %v154
    %v379 = vunpack.c.l.b16 %v155
    %v380 = vunpack.c.h.b16 %v155
    %v381 = vunpack.c.l.b16 %v156
    %v382 = vunpack.c.h.b16 %v156
    %v383 = vunpack.c.l.b16 %v157
    %v384 = vunpack.c.h.b16 %v157
    %v385 = vunpack.c.l.b16 %v158
    %v386 = vunpack.c.h.b16 %v158
    %v387 = vpack.c.b16 %v263, %v259
    %v388 = vpack.c.b16 %v264, %v260
    %v389 = vpack.c.b16 %v265, %v261
    %v390 = vpack.c.b16 %v266, %v262
    %v391 = vpack.c.b16 %v271, %v267
    %v392 = vpack.c.b16 %v272, %v268
    %v393 = vpack.c.b16 %v273, %v269
    %v394 = vpack.c.b16 %v274, %v270
    %v395 = vpack.c.b16 %v279, %v275
    %v396 = vpack.c.b16 %v280, %v276
    %v397 = vpack.c.b16 %v281, %v277
    %v398 = vpack.c.b16 %v282, %v278
    %v399 = vpack.c.b16 %v287, %v283
    %v400 = vpack.c.b16 %v288, %v284
    %v401 = vpack.c.b16 %v289, %v285
    %v402 = vpack.c.b16 %v290, %v286
    %v403 = vpack.c.b16 %v295, %v291
    %v404 = vpack.c.b16 %v296, %v292
    %v405 = vpack.c.b16 %v297, %v293
    %v406 = vpack.c.b16 %v298, %v294
    %v407 = vpack.c.b16 %v303, %v299
    %v408 = vpack.c.b16 %v304, %v300
    %v409 = vpack.c.b16 %v305, %v301
    %v410 = vpack.c.b16 %v306, %v302
    %v411 = vpack.c.b16 %v311, %v307
    %v412 = vpack.c.b16 %v312, %v308
    %v413 = vpack.c.b16 %v313, %v309
    %v414 = vpack.c.b16 %v314, %v310
    %v415 = vpack.c.b16 %v319, %v315
    %v416 = vpack.c.b16 %v320, %v316
    %v417 = vpack.c.b16 %v321, %v317
    %v418 = vpack.c.b16 %v322, %v318
    %v419 = vpack.c.b16 %v327, %v323
    %v420 = vpack.c.b16 %v328, %v324
    %v421 = vpack.c.b16 %v329, %v325
    %v422 = vpack.c.b16 %v330, %v326
    %v423 = vpack.c.b16 %v335, %v331
    %v424 = vpack.c.b16 %v336, %v332
    %v425 = vpack.c.b16 %v337, %v333
    %v426 = vpack.c.b16 %v338, %v334
    %v427 = vpack.c.b16 %v343, %v339
    %v428 = vpack.c.b16 %v344, %v340
    %v429 = vpack.c.b16 %v345, %v341
    %v430 = vpack.c.b16 %v346, %v342
    %v431 = vpack.c.b16 %v351, %v347
    %v432 = vpack.c.b16 %v352, %v348
    %v433 = vpack.c.b16 %v353, %v349
    %v434 = vpack.c.b16 %v354, %v350
    %v435 = vpack.c.b16 %v359, %v355
    %v436 = vpack.c.b16 %v360, %v356
    %v437 = vpack.c.b16 %v361, %v357
    %v438 = vpack.c.b16 %v362, %v358
    %v439 = vpack.c.b16 %v367, %v363
    %v440 = vpack.c.b16 %v368, %v364
    %v441 = vpack.c.b16 %v369, %v365
    %v442 = vpack.c.b16 %v370, %v366
    %v443 = vpack.c.b16 %v375, %v371
    %v444 = vpack.c.b16 %v376, %v372
    %v445 = vpack.c.b16 %v377, %v373
    %v446 = vpack.c.b16 %v378, %v374
    %v447 = vpack.c.b16 %v383, %v379
    %v448 = vpack.c.b16 %v384, %v380
    %v449 = vpack.c.b16 %v385, %v381
    %v450 = vpack.c.b16 %v386, %v382
    %515 = vmatprep.subr.bf16.mxu0 %v416
    %516 = vmatpush1.bf16.msra.mxu0 %v415
    %517 = vmatprep.subr.bf16.mxu0 %v412
    %518 = vmatpush1.bf16.msra.mxu0 %v411
    %519 = vmatprep.subr.bf16.mxu0 %v408
    %520 = vmatpush1.bf16.msra.mxu0 %v407
    %521 = vmatprep.subr.bf16.mxu0 %v404
    %522 = vmatpush1.bf16.msra.mxu0 %v403
    %523 = vmatprep.subr.bf16.mxu0 %v400
    %524 = vmatpush1.bf16.msra.mxu0 %v399
    %525 = vmatprep.subr.bf16.mxu0 %v396
    %526 = vmatpush1.bf16.msra.mxu0 %v395
    %527 = vmatprep.subr.bf16.mxu0 %v392
    %528 = vmatpush1.bf16.msra.mxu0 %v391
    %529 = vmatprep.subr.bf16.mxu0 %v388
    %530 = vmatpush1.bf16.msra.mxu0 %v387
    %531 = vmatprep.subr.bf16.mxu0 %v448
    %532 = vmatpush2.bf16.msra.mxu0 %v447
    %533 = vmatprep.subr.bf16.mxu0 %v444
    %534 = vmatpush2.bf16.msra.mxu0 %v443
    %535 = vmatprep.subr.bf16.mxu0 %v440
    %536 = vmatpush2.bf16.msra.mxu0 %v439
    %537 = vmatprep.subr.bf16.mxu0 %v436
    %538 = vmatpush2.bf16.msra.mxu0 %v435
    %539 = vmatprep.subr.bf16.mxu0 %v432
    %540 = vmatpush2.bf16.msra.mxu0 %v431
    %541 = vmatprep.subr.bf16.mxu0 %v428
    %542 = vmatpush2.bf16.msra.mxu0 %v427
    %543 = vmatprep.subr.bf16.mxu0 %v424
    %544 = vmatpush2.bf16.msra.mxu0 %v423
    %545 = vmatprep.subr.bf16.mxu0 %v420
    %546 = vmatpush2.bf16.msra.mxu0 %v419
    %547 = vmatprep.mubr.bf16.mxu0 %v192
    %548 = vmatmul.mubr.bf16.gmra.mxu0 %v191
    %v549 = vpop.f32.mrf.mxu0
    %v550 = vadd.f32 %v171, %v549
    %v551 = vpop.f32.mrf.mxu0
    %v552 = vadd.f32 %v175, %v551
    %v553 = vpop.f32.mrf.mxu0
    %v554 = vpop.f32.mrf.mxu0
    %555 = vdwg.mxu0
    %556 = vmatprep.subr.bf16.mxu0 %v418
    %557 = vmatpush1.bf16.msra.mxu0 %v417
    %558 = vmatprep.subr.bf16.mxu0 %v414
    %559 = vmatpush1.bf16.msra.mxu0 %v413
    %560 = vmatprep.subr.bf16.mxu0 %v410
    %561 = vmatpush1.bf16.msra.mxu0 %v409
    %562 = vmatprep.subr.bf16.mxu0 %v406
    %563 = vmatpush1.bf16.msra.mxu0 %v405
    %564 = vmatprep.subr.bf16.mxu0 %v402
    %565 = vmatpush1.bf16.msra.mxu0 %v401
    %566 = vmatprep.subr.bf16.mxu0 %v398
    %567 = vmatpush1.bf16.msra.mxu0 %v397
    %568 = vmatprep.subr.bf16.mxu0 %v394
    %569 = vmatpush1.bf16.msra.mxu0 %v393
    %570 = vmatprep.subr.bf16.mxu0 %v390
    %571 = vmatpush1.bf16.msra.mxu0 %v389
    %572 = vmatprep.subr.bf16.mxu0 %v450
    %573 = vmatpush2.bf16.msra.mxu0 %v449
    %574 = vmatprep.subr.bf16.mxu0 %v446
    %575 = vmatpush2.bf16.msra.mxu0 %v445
    %576 = vmatprep.subr.bf16.mxu0 %v442
    %577 = vmatpush2.bf16.msra.mxu0 %v441
    %578 = vmatprep.subr.bf16.mxu0 %v438
    %579 = vmatpush2.bf16.msra.mxu0 %v437
    %580 = vmatprep.subr.bf16.mxu0 %v434
    %581 = vmatpush2.bf16.msra.mxu0 %v433
    %582 = vmatprep.subr.bf16.mxu0 %v430
    %583 = vmatpush2.bf16.msra.mxu0 %v429
    %584 = vmatprep.subr.bf16.mxu0 %v426
    %585 = vmatpush2.bf16.msra.mxu0 %v425
    %586 = vmatprep.subr.bf16.mxu0 %v422
    %587 = vmatpush2.bf16.msra.mxu0 %v421
    %588 = vmatprep.mubr.bf16.mxu0 %v192
    %589 = vmatmul.mubr.bf16.gmra.mxu0 %v191
    %v590 = vpop.f32.mrf.mxu0
    %v591 = vadd.f32 %v179, %v590
    %v592 = vpop.f32.mrf.mxu0
    %v593 = vadd.f32 %v183, %v592
    %v594 = vpop.f32.mrf.mxu0
    %v595 = vpop.f32.mrf.mxu0
    %596 = vdwg.mxu0
    %v597 = vxor.u32 %v550, 2147483648
    %v598 = vmul.f32 %v597, 1.442695
    %v599 = vpow.pop %v598
    %v600 = vadd.f32 %v599, 1.0
    %v601 = vrcp.pop %v600
    %v602 = vmul.f32 1.0, %v601
    %v603 = vxor.u32 %v552, 2147483648
    %v604 = vmul.f32 %v603, 1.442695
    %v605 = vpow.pop %v604
    %v606 = vadd.f32 %v605, 1.0
    %v607 = vrcp.pop %v606
    %v608 = vmul.f32 1.0, %v607
    %v609 = vtanh.pop %v591
    %v610 = vxor.u32 %v593, 2147483648
    %v611 = vmul.f32 %v610, 1.442695
    %v612 = vpow.pop %v611
    %v613 = vadd.f32 %v612, 1.0
    %v614 = vrcp.pop %v613
    %v615 = vmul.f32 1.0, %v614
    %v616 = vmul.f32 %v608, %v161
    %v617 = vmul.f32 %v602, %v609
    %v618 = vadd.f32 %v616, %v617
    %v619 = vtanh.pop %v618
    %v620 = vmul.f32 %v615, %v619
    %621 = vst [vmem:[#allocation2] sm:$0xff] %v620
    %622 = vst [vmem:[#allocation3] sm:$0xff] %v618
    %v623 = vpack.c.bf16 %v620, %v620
    %624 = vst [vmem:[#allocation14] sm:$0xf] %v623
    %v625 = vld [vmem:[#allocation2] sm:$0xff]
    %v626 = vld [vmem:[#allocation3] sm:$0xff]
    %s627 = scalar_lea.vmem [#allocation5], 4
    %v628 = vld [vmem:[%s627] sm:$0xf]
    %629 = vst [vmem:[#allocation4] sm:$0xf] %v628
    %v630 = vpack.c.bf16 %v625, %v625
    %631 = vst [vmem:[#allocation4 + $0x4] sm:$0xf] %v630
    %v632 = vld [vmem:[#allocation4] sm:$0xff]
    %v634 = vunpack.c.l.b16 %v632
    %v635 = vunpack.c.h.b16 %v632
    %v636 = vpack.c.b16 %v634, %v634
    %v637 = vpack.c.b16 %v635, %v635
    %640 = vmatprep.subr.bf16.mxu0 %v416
    %641 = vmatpush1.bf16.msra.mxu0 %v415
    %642 = vmatprep.subr.bf16.mxu0 %v412
    %643 = vmatpush1.bf16.msra.mxu0 %v411
    %644 = vmatprep.subr.bf16.mxu0 %v408
    %645 = vmatpush1.bf16.msra.mxu0 %v407
    %646 = vmatprep.subr.bf16.mxu0 %v404
    %647 = vmatpush1.bf16.msra.mxu0 %v403
    %648 = vmatprep.subr.bf16.mxu0 %v400
    %649 = vmatpush1.bf16.msra.mxu0 %v399
    %650 = vmatprep.subr.bf16.mxu0 %v396
    %651 = vmatpush1.bf16.msra.mxu0 %v395
    %652 = vmatprep.subr.bf16.mxu0 %v392
    %653 = vmatpush1.bf16.msra.mxu0 %v391
    %654 = vmatprep.subr.bf16.mxu0 %v388
    %655 = vmatpush1.bf16.msra.mxu0 %v387
    %656 = vmatprep.subr.bf16.mxu0 %v448
    %657 = vmatpush2.bf16.msra.mxu0 %v447
    %658 = vmatprep.subr.bf16.mxu0 %v444
    %659 = vmatpush2.bf16.msra.mxu0 %v443
    %660 = vmatprep.subr.bf16.mxu0 %v440
    %661 = vmatpush2.bf16.msra.mxu0 %v439
    %662 = vmatprep.subr.bf16.mxu0 %v436
    %663 = vmatpush2.bf16.msra.mxu0 %v435
    %664 = vmatprep.subr.bf16.mxu0 %v432
    %665 = vmatpush2.bf16.msra.mxu0 %v431
    %666 = vmatprep.subr.bf16.mxu0 %v428
    %667 = vmatpush2.bf16.msra.mxu0 %v427
    %668 = vmatprep.subr.bf16.mxu0 %v424
    %669 = vmatpush2.bf16.msra.mxu0 %v423
    %670 = vmatprep.subr.bf16.mxu0 %v420
    %671 = vmatpush2.bf16.msra.mxu0 %v419
    %672 = vmatprep.mubr.bf16.mxu0 %v637
    %673 = vmatmul.mubr.bf16.gmra.mxu0 %v636
    %v674 = vpop.f32.mrf.mxu0
    %v675 = vadd.f32 %v171, %v674
    %v676 = vpop.f32.mrf.mxu0
    %v677 = vadd.f32 %v175, %v676
    %v678 = vpop.f32.mrf.mxu0
    %v679 = vpop.f32.mrf.mxu0
    %680 = vdwg.mxu0
    %681 = vmatprep.subr.bf16.mxu0 %v418
    %682 = vmatpush1.bf16.msra.mxu0 %v417
    %683 = vmatprep.subr.bf16.mxu0 %v414
    %684 = vmatpush1.bf16.msra.mxu0 %v413
    %685 = vmatprep.subr.bf16.mxu0 %v410
    %686 = vmatpush1.bf16.msra.mxu0 %v409
    %687 = vmatprep.subr.bf16.mxu0 %v406
    %688 = vmatpush1.bf16.msra.mxu0 %v405
    %689 = vmatprep.subr.bf16.mxu0 %v402
    %690 = vmatpush1.bf16.msra.mxu0 %v401
    %691 = vmatprep.subr.bf16.mxu0 %v398
    %692 = vmatpush1.bf16.msra.mxu0 %v397
    %693 = vmatprep.subr.bf16.mxu0 %v394
    %694 = vmatpush1.bf16.msra.mxu0 %v393
    %695 = vmatprep.subr.bf16.mxu0 %v390
    %696 = vmatpush1.bf16.msra.mxu0 %v389
    %697 = vmatprep.subr.bf16.mxu0 %v450
    %698 = vmatpush2.bf16.msra.mxu0 %v449
    %699 = vmatprep.subr.bf16.mxu0 %v446
    %700 = vmatpush2.bf16.msra.mxu0 %v445
    %701 = vmatprep.subr.bf16.mxu0 %v442
    %702 = vmatpush2.bf16.msra.mxu0 %v441
    %703 = vmatprep.subr.bf16.mxu0 %v438
    %704 = vmatpush2.bf16.msra.mxu0 %v437
    %705 = vmatprep.subr.bf16.mxu0 %v434
    %706 = vmatpush2.bf16.msra.mxu0 %v433
    %707 = vmatprep.subr.bf16.mxu0 %v430
    %708 = vmatpush2.bf16.msra.mxu0 %v429
    %709 = vmatprep.subr.bf16.mxu0 %v426
    %710 = vmatpush2.bf16.msra.mxu0 %v425
    %711 = vmatprep.subr.bf16.mxu0 %v422
    %712 = vmatpush2.bf16.msra.mxu0 %v421
    %713 = vmatprep.mubr.bf16.mxu0 %v637
    %714 = vmatmul.mubr.bf16.gmra.mxu0 %v636
    %v715 = vpop.f32.mrf.mxu0
    %v716 = vadd.f32 %v179, %v715
    %v717 = vpop.f32.mrf.mxu0
    %v718 = vadd.f32 %v183, %v717
    %v719 = vpop.f32.mrf.mxu0
    %v720 = vpop.f32.mrf.mxu0
    %721 = vdwg.mxu0
    %v722 = vxor.u32 %v675, 2147483648
    %v723 = vmul.f32 %v722, 1.442695
    %v724 = vpow.pop %v723
    %v725 = vadd.f32 %v724, 1.0
    %v726 = vrcp.pop %v725
    %v727 = vmul.f32 1.0, %v726
    %v728 = vxor.u32 %v677, 2147483648
    %v729 = vmul.f32 %v728, 1.442695
    %v730 = vpow.pop %v729
    %v731 = vadd.f32 %v730, 1.0
    %v732 = vrcp.pop %v731
    %v733 = vmul.f32 1.0, %v732
    %v734 = vtanh.pop %v716
    %v735 = vxor.u32 %v718, 2147483648
    %v736 = vmul.f32 %v735, 1.442695
    %v737 = vpow.pop %v736
    %v738 = vadd.f32 %v737, 1.0
    %v739 = vrcp.pop %v738
    %v740 = vmul.f32 1.0, %v739
    %v741 = vmul.f32 %v733, %v626
    %v742 = vmul.f32 %v727, %v734
    %v743 = vadd.f32 %v741, %v742
    %v744 = vtanh.pop %v743
    %v745 = vmul.f32 %v740, %v744
    %746 = vst [vmem:[#allocation2] sm:$0xff] %v745
    %747 = vst [vmem:[#allocation3] sm:$0xff] %v743
    %v748 = vpack.c.bf16 %v745, %v745
    %s749 = scalar_lea.vmem [#allocation14], 4
    %750 = vst [vmem:[%s749] sm:$0xf] %v748
    %v751 = vld [vmem:[#allocation2] sm:$0xff]
    %v752 = vld [vmem:[#allocation3] sm:$0xff]
    %s753 = scalar_lea.vmem [#allocation5], 8
    %v754 = vld [vmem:[%s753] sm:$0xf]
    %755 = vst [vmem:[#allocation4] sm:$0xf] %v754
    %v756 = vpack.c.bf16 %v751, %v751
    %757 = vst [vmem:[#allocation4 + $0x4] sm:$0xf] %v756
    %v758 = vld [vmem:[#allocation4] sm:$0xff]
    %v760 = vunpack.c.l.b16 %v758
    %v761 = vunpack.c.h.b16 %v758
    %v762 = vpack.c.b16 %v760, %v760
    %v763 = vpack.c.b16 %v761, %v761
    %766 = vmatprep.subr.bf16.mxu0 %v416
    %767 = vmatpush1.bf16.msra.mxu0 %v415
    %768 = vmatprep.subr.bf16.mxu0 %v412
    %769 = vmatpush1.bf16.msra.mxu0 %v411
    %770 = vmatprep.subr.bf16.mxu0 %v408
    %771 = vmatpush1.bf16.msra.mxu0 %v407
    %772 = vmatprep.subr.bf16.mxu0 %v404
    %773 = vmatpush1.bf16.msra.mxu0 %v403
    %774 = vmatprep.subr.bf16.mxu0 %v400
    %775 = vmatpush1.bf16.msra.mxu0 %v399
    %776 = vmatprep.subr.bf16.mxu0 %v396
    %777 = vmatpush1.bf16.msra.mxu0 %v395
    %778 = vmatprep.subr.bf16.mxu0 %v392
    %779 = vmatpush1.bf16.msra.mxu0 %v391
    %780 = vmatprep.subr.bf16.mxu0 %v388
    %781 = vmatpush1.bf16.msra.mxu0 %v387
    %782 = vmatprep.subr.bf16.mxu0 %v448
    %783 = vmatpush2.bf16.msra.mxu0 %v447
    %784 = vmatprep.subr.bf16.mxu0 %v444
    %785 = vmatpush2.bf16.msra.mxu0 %v443
    %786 = vmatprep.subr.bf16.mxu0 %v440
    %787 = vmatpush2.bf16.msra.mxu0 %v439
    %788 = vmatprep.subr.bf16.mxu0 %v436
    %789 = vmatpush2.bf16.msra.mxu0 %v435
    %790 = vmatprep.subr.bf16.mxu0 %v432
    %791 = vmatpush2.bf16.msra.mxu0 %v431
    %792 = vmatprep.subr.bf16.mxu0 %v428
    %793 = vmatpush2.bf16.msra.mxu0 %v427
    %794 = vmatprep.subr.bf16.mxu0 %v424
    %795 = vmatpush2.bf16.msra.mxu0 %v423
    %796 = vmatprep.subr.bf16.mxu0 %v420
    %797 = vmatpush2.bf16.msra.mxu0 %v419
    %798 = vmatprep.mubr.bf16.mxu0 %v763
    %799 = vmatmul.mubr.bf16.gmra.mxu0 %v762
    %v800 = vpop.f32.mrf.mxu0
    %v801 = vadd.f32 %v171, %v800
    %v802 = vpop.f32.mrf.mxu0
    %v803 = vadd.f32 %v175, %v802
    %v804 = vpop.f32.mrf.mxu0
    %v805 = vpop.f32.mrf.mxu0
    %806 = vdwg.mxu0
    %807 = vmatprep.subr.bf16.mxu0 %v418
    %808 = vmatpush1.bf16.msra.mxu0 %v417
    %809 = vmatprep.subr.bf16.mxu0 %v414
    %810 = vmatpush1.bf16.msra.mxu0 %v413
    %811 = vmatprep.subr.bf16.mxu0 %v410
    %812 = vmatpush1.bf16.msra.mxu0 %v409
    %813 = vmatprep.subr.bf16.mxu0 %v406
    %814 = vmatpush1.bf16.msra.mxu0 %v405
    %815 = vmatprep.subr.bf16.mxu0 %v402
    %816 = vmatpush1.bf16.msra.mxu0 %v401
    %817 = vmatprep.subr.bf16.mxu0 %v398
    %818 = vmatpush1.bf16.msra.mxu0 %v397
    %819 = vmatprep.subr.bf16.mxu0 %v394
    %820 = vmatpush1.bf16.msra.mxu0 %v393
    %821 = vmatprep.subr.bf16.mxu0 %v390
    %822 = vmatpush1.bf16.msra.mxu0 %v389
    %823 = vmatprep.subr.bf16.mxu0 %v450
    %824 = vmatpush2.bf16.msra.mxu0 %v449
    %825 = vmatprep.subr.bf16.mxu0 %v446
    %826 = vmatpush2.bf16.msra.mxu0 %v445
    %827 = vmatprep.subr.bf16.mxu0 %v442
    %828 = vmatpush2.bf16.msra.mxu0 %v441
    %829 = vmatprep.subr.bf16.mxu0 %v438
    %830 = vmatpush2.bf16.msra.mxu0 %v437
    %831 = vmatprep.subr.bf16.mxu0 %v434
    %832 = vmatpush2.bf16.msra.mxu0 %v433
    %833 = vmatprep.subr.bf16.mxu0 %v430
    %834 = vmatpush2.bf16.msra.mxu0 %v429
    %835 = vmatprep.subr.bf16.mxu0 %v426
    %836 = vmatpush2.bf16.msra.mxu0 %v425
    %837 = vmatprep.subr.bf16.mxu0 %v422
    %838 = vmatpush2.bf16.msra.mxu0 %v421
    %839 = vmatprep.mubr.bf16.mxu0 %v763
    %840 = vmatmul.mubr.bf16.gmra.mxu0 %v762
    %v841 = vpop.f32.mrf.mxu0
    %v842 = vadd.f32 %v179, %v841
    %v843 = vpop.f32.mrf.mxu0
    %v844 = vadd.f32 %v183, %v843
    %v845 = vpop.f32.mrf.mxu0
    %v846 = vpop.f32.mrf.mxu0
    %847 = vdwg.mxu0
    %v848 = vxor.u32 %v801, 2147483648
    %v849 = vmul.f32 %v848, 1.442695
    %v850 = vpow.pop %v849
    %v851 = vadd.f32 %v850, 1.0
    %v852 = vrcp.pop %v851
    %v853 = vmul.f32 1.0, %v852
    %v854 = vxor.u32 %v803, 2147483648
    %v855 = vmul.f32 %v854, 1.442695
    %v856 = vpow.pop %v855
    %v857 = vadd.f32 %v856, 1.0
    %v858 = vrcp.pop %v857
    %v859 = vmul.f32 1.0, %v858
    %v860 = vtanh.pop %v842
    %v861 = vxor.u32 %v844, 2147483648
    %v862 = vmul.f32 %v861, 1.442695
    %v863 = vpow.pop %v862
    %v864 = vadd.f32 %v863, 1.0
    %v865 = vrcp.pop %v864
    %v866 = vmul.f32 1.0, %v865
    %v867 = vmul.f32 %v859, %v752
    %v868 = vmul.f32 %v853, %v860
    %v869 = vadd.f32 %v867, %v868
    %v870 = vtanh.pop %v869
    %v871 = vmul.f32 %v866, %v870
    %872 = vst [vmem:[#allocation2] sm:$0xff] %v871
    %873 = vst [vmem:[#allocation3] sm:$0xff] %v869
    %v874 = vpack.c.bf16 %v871, %v871
    %s875 = scalar_lea.vmem [#allocation14], 8
    %876 = vst [vmem:[%s875] sm:$0xf] %v874
    %v877 = vld [vmem:[#allocation2] sm:$0xff]
    %v878 = vld [vmem:[#allocation3] sm:$0xff]
    %s879 = scalar_lea.vmem [#allocation5], 12
    %v880 = vld [vmem:[%s879] sm:$0xf]
    %881 = vst [vmem:[#allocation4] sm:$0xf] %v880
    %v882 = vpack.c.bf16 %v877, %v877
    %883 = vst [vmem:[#allocation4 + $0x4] sm:$0xf] %v882
    %v884 = vld [vmem:[#allocation4] sm:$0xff]
    %v886 = vunpack.c.l.b16 %v884
    %v887 = vunpack.c.h.b16 %v884
    %v888 = vpack.c.b16 %v886, %v886
    %v889 = vpack.c.b16 %v887, %v887
    %892 = vmatprep.subr.bf16.mxu0 %v416
    %893 = vmatpush1.bf16.msra.mxu0 %v415
    %894 = vmatprep.subr.bf16.mxu0 %v412
    %895 = vmatpush1.bf16.msra.mxu0 %v411
    %896 = vmatprep.subr.bf16.mxu0 %v408
    %897 = vmatpush1.bf16.msra.mxu0 %v407
    %898 = vmatprep.subr.bf16.mxu0 %v404
    %899 = vmatpush1.bf16.msra.mxu0 %v403
    %900 = vmatprep.subr.bf16.mxu0 %v400
    %901 = vmatpush1.bf16.msra.mxu0 %v399
    %902 = vmatprep.subr.bf16.mxu0 %v396
    %903 = vmatpush1.bf16.msra.mxu0 %v395
    %904 = vmatprep.subr.bf16.mxu0 %v392
    %905 = vmatpush1.bf16.msra.mxu0 %v391
    %906 = vmatprep.subr.bf16.mxu0 %v388
    %907 = vmatpush1.bf16.msra.mxu0 %v387
    %908 = vmatprep.subr.bf16.mxu0 %v448
    %909 = vmatpush2.bf16.msra.mxu0 %v447
    %910 = vmatprep.subr.bf16.mxu0 %v444
    %911 = vmatpush2.bf16.msra.mxu0 %v443
    %912 = vmatprep.subr.bf16.mxu0 %v440
    %913 = vmatpush2.bf16.msra.mxu0 %v439
    %914 = vmatprep.subr.bf16.mxu0 %v436
    %915 = vmatpush2.bf16.msra.mxu0 %v435
    %916 = vmatprep.subr.bf16.mxu0 %v432
    %917 = vmatpush2.bf16.msra.mxu0 %v431
    %918 = vmatprep.subr.bf16.mxu0 %v428
    %919 = vmatpush2.bf16.msra.mxu0 %v427
    %920 = vmatprep.subr.bf16.mxu0 %v424
    %921 = vmatpush2.bf16.msra.mxu0 %v423
    %922 = vmatprep.subr.bf16.mxu0 %v420
    %923 = vmatpush2.bf16.msra.mxu0 %v419
    %924 = vmatprep.mubr.bf16.mxu0 %v889
    %925 = vmatmul.mubr.bf16.gmra.mxu0 %v888
    %v926 = vpop.f32.mrf.mxu0
    %v927 = vadd.f32 %v171, %v926
    %v928 = vpop.f32.mrf.mxu0
    %v929 = vadd.f32 %v175, %v928
    %v930 = vpop.f32.mrf.mxu0
    %v931 = vpop.f32.mrf.mxu0
    %932 = vdwg.mxu0
    %933 = vmatprep.subr.bf16.mxu0 %v418
    %934 = vmatpush1.bf16.msra.mxu0 %v417
    %935 = vmatprep.subr.bf16.mxu0 %v414
    %936 = vmatpush1.bf16.msra.mxu0 %v413
    %937 = vmatprep.subr.bf16.mxu0 %v410
    %938 = vmatpush1.bf16.msra.mxu0 %v409
    %939 = vmatprep.subr.bf16.mxu0 %v406
    %940 = vmatpush1.bf16.msra.mxu0 %v405
    %941 = vmatprep.subr.bf16.mxu0 %v402
    %942 = vmatpush1.bf16.msra.mxu0 %v401
    %943 = vmatprep.subr.bf16.mxu0 %v398
    %944 = vmatpush1.bf16.msra.mxu0 %v397
    %945 = vmatprep.subr.bf16.mxu0 %v394
    %946 = vmatpush1.bf16.msra.mxu0 %v393
    %947 = vmatprep.subr.bf16.mxu0 %v390
    %948 = vmatpush1.bf16.msra.mxu0 %v389
    %949 = vmatprep.subr.bf16.mxu0 %v450
    %950 = vmatpush2.bf16.msra.mxu0 %v449
    %951 = vmatprep.subr.bf16.mxu0 %v446
    %952 = vmatpush2.bf16.msra.mxu0 %v445
    %953 = vmatprep.subr.bf16.mxu0 %v442
    %954 = vmatpush2.bf16.msra.mxu0 %v441
    %955 = vmatprep.subr.bf16.mxu0 %v438
    %956 = vmatpush2.bf16.msra.mxu0 %v437
    %957 = vmatprep.subr.bf16.mxu0 %v434
    %958 = vmatpush2.bf16.msra.mxu0 %v433
    %959 = vmatprep.subr.bf16.mxu0 %v430
    %960 = vmatpush2.bf16.msra.mxu0 %v429
    %961 = vmatprep.subr.bf16.mxu0 %v426
    %962 = vmatpush2.bf16.msra.mxu0 %v425
    %963 = vmatprep.subr.bf16.mxu0 %v422
    %964 = vmatpush2.bf16.msra.mxu0 %v421
    %965 = vmatprep.mubr.bf16.mxu0 %v889
    %966 = vmatmul.mubr.bf16.gmra.mxu0 %v888
    %v967 = vpop.f32.mrf.mxu0
    %v968 = vadd.f32 %v179, %v967
    %v969 = vpop.f32.mrf.mxu0
    %v970 = vadd.f32 %v183, %v969
    %v971 = vpop.f32.mrf.mxu0
    %v972 = vpop.f32.mrf.mxu0
    %973 = vdwg.mxu0
    %v974 = vxor.u32 %v927, 2147483648
    %v975 = vmul.f32 %v974, 1.442695
    %v976 = vpow.pop %v975
    %v977 = vadd.f32 %v976, 1.0
    %v978 = vrcp.pop %v977
    %v979 = vmul.f32 1.0, %v978
    %v980 = vxor.u32 %v929, 2147483648
    %v981 = vmul.f32 %v980, 1.442695
    %v982 = vpow.pop %v981
    %v983 = vadd.f32 %v982, 1.0
    %v984 = vrcp.pop %v983
    %v985 = vmul.f32 1.0, %v984
    %v986 = vtanh.pop %v968
    %v987 = vxor.u32 %v970, 2147483648
    %v988 = vmul.f32 %v987, 1.442695
    %v989 = vpow.pop %v988
    %v990 = vadd.f32 %v989, 1.0
    %v991 = vrcp.pop %v990
    %v992 = vmul.f32 1.0, %v991
    %v993 = vmul.f32 %v985, %v878
    %v994 = vmul.f32 %v979, %v986
    %v995 = vadd.f32 %v993, %v994
    %v996 = vtanh.pop %v995
    %v997 = vmul.f32 %v992, %v996
    %998 = vst [vmem:[#allocation2] sm:$0xff] %v997
    %999 = vst [vmem:[#allocation3] sm:$0xff] %v995
    %v1000 = vpack.c.bf16 %v997, %v997
    %s1001 = scalar_lea.vmem [#allocation14], 12
    %1002 = vst [vmem:[%s1001] sm:$0xf] %v1000
    %v1003 = vld [vmem:[#allocation2] sm:$0xff]
    %v1004 = vld [vmem:[#allocation3] sm:$0xff]
    %s1005 = scalar_lea.vmem [#allocation5], 16
    %v1006 = vld [vmem:[%s1005] sm:$0xf]
    %1007 = vst [vmem:[#allocation4] sm:$0xf] %v1006
    %v1008 = vpack.c.bf16 %v1003, %v1003
    %1009 = vst [vmem:[#allocation4 + $0x4] sm:$0xf] %v1008
    %v1010 = vld [vmem:[#allocation4] sm:$0xff]
    %v1012 = vunpack.c.l.b16 %v1010
    %v1013 = vunpack.c.h.b16 %v1010
    %v1014 = vpack.c.b16 %v1012, %v1012
    %v1015 = vpack.c.b16 %v1013, %v1013
    %1018 = vmatprep.subr.bf16.mxu0 %v416
    %1019 = vmatpush1.bf16.msra.mxu0 %v415
    %1020 = vmatprep.subr.bf16.mxu0 %v412
    %1021 = vmatpush1.bf16.msra.mxu0 %v411
    %1022 = vmatprep.subr.bf16.mxu0 %v408
    %1023 = vmatpush1.bf16.msra.mxu0 %v407
    %1024 = vmatprep.subr.bf16.mxu0 %v404
    %1025 = vmatpush1.bf16.msra.mxu0 %v403
    %1026 = vmatprep.subr.bf16.mxu0 %v400
    %1027 = vmatpush1.bf16.msra.mxu0 %v399
    %1028 = vmatprep.subr.bf16.mxu0 %v396
    %1029 = vmatpush1.bf16.msra.mxu0 %v395
    %1030 = vmatprep.subr.bf16.mxu0 %v392
    %1031 = vmatpush1.bf16.msra.mxu0 %v391
    %1032 = vmatprep.subr.bf16.mxu0 %v388
    %1033 = vmatpush1.bf16.msra.mxu0 %v387
    %1034 = vmatprep.subr.bf16.mxu0 %v448
    %1035 = vmatpush2.bf16.msra.mxu0 %v447
    %1036 = vmatprep.subr.bf16.mxu0 %v444
    %1037 = vmatpush2.bf16.msra.mxu0 %v443
    %1038 = vmatprep.subr.bf16.mxu0 %v440
    %1039 = vmatpush2.bf16.msra.mxu0 %v439
    %1040 = vmatprep.subr.bf16.mxu0 %v436
    %1041 = vmatpush2.bf16.msra.mxu0 %v435
    %1042 = vmatprep.subr.bf16.mxu0 %v432
    %1043 = vmatpush2.bf16.msra.mxu0 %v431
    %1044 = vmatprep.subr.bf16.mxu0 %v428
    %1045 = vmatpush2.bf16.msra.mxu0 %v427
    %1046 = vmatprep.subr.bf16.mxu0 %v424
    %1047 = vmatpush2.bf16.msra.mxu0 %v423
    %1048 = vmatprep.subr.bf16.mxu0 %v420
    %1049 = vmatpush2.bf16.msra.mxu0 %v419
    %1050 = vmatprep.mubr.bf16.mxu0 %v1015
    %1051 = vmatmul.mubr.bf16.gmra.mxu0 %v1014
    %v1052 = vpop.f32.mrf.mxu0
    %v1053 = vadd.f32 %v171, %v1052
    %v1054 = vpop.f32.mrf.mxu0
    %v1055 = vadd.f32 %v175, %v1054
    %v1056 = vpop.f32.mrf.mxu0
    %v1057 = vpop.f32.mrf.mxu0
    %1058 = vdwg.mxu0
    %1059 = vmatprep.subr.bf16.mxu0 %v418
    %1060 = vmatpush1.bf16.msra.mxu0 %v417
    %1061 = vmatprep.subr.bf16.mxu0 %v414
    %1062 = vmatpush1.bf16.msra.mxu0 %v413
    %1063 = vmatprep.subr.bf16.mxu0 %v410
    %1064 = vmatpush1.bf16.msra.mxu0 %v409
    %1065 = vmatprep.subr.bf16.mxu0 %v406
    %1066 = vmatpush1.bf16.msra.mxu0 %v405
    %1067 = vmatprep.subr.bf16.mxu0 %v402
    %1068 = vmatpush1.bf16.msra.mxu0 %v401
    %1069 = vmatprep.subr.bf16.mxu0 %v398
    %1070 = vmatpush1.bf16.msra.mxu0 %v397
    %1071 = vmatprep.subr.bf16.mxu0 %v394
    %1072 = vmatpush1.bf16.msra.mxu0 %v393
    %1073 = vmatprep.subr.bf16.mxu0 %v390
    %1074 = vmatpush1.bf16.msra.mxu0 %v389
    %1075 = vmatprep.subr.bf16.mxu0 %v450
    %1076 = vmatpush2.bf16.msra.mxu0 %v449
    %1077 = vmatprep.subr.bf16.mxu0 %v446
    %1078 = vmatpush2.bf16.msra.mxu0 %v445
    %1079 = vmatprep.subr.bf16.mxu0 %v442
    %1080 = vmatpush2.bf16.msra.mxu0 %v441
    %1081 = vmatprep.subr.bf16.mxu0 %v438
    %1082 = vmatpush2.bf16.msra.mxu0 %v437
    %1083 = vmatprep.subr.bf16.mxu0 %v434
    %1084 = vmatpush2.bf16.msra.mxu0 %v433
    %1085 = vmatprep.subr.bf16.mxu0 %v430
    %1086 = vmatpush2.bf16.msra.mxu0 %v429
    %1087 = vmatprep.subr.bf16.mxu0 %v426
    %1088 = vmatpush2.bf16.msra.mxu0 %v425
    %1089 = vmatprep.subr.bf16.mxu0 %v422
    %1090 = vmatpush2.bf16.msra.mxu0 %v421
    %1091 = vmatprep.mubr.bf16.mxu0 %v1015
    %1092 = vmatmul.mubr.bf16.gmra.mxu0 %v1014
    %v1093 = vpop.f32.mrf.mxu0
    %v1094 = vadd.f32 %v179, %v1093
    %v1095 = vpop.f32.mrf.mxu0
    %v1096 = vadd.f32 %v183, %v1095
    %v1097 = vpop.f32.mrf.mxu0
    %v1098 = vpop.f32.mrf.mxu0
    %1099 = vdwg.mxu0
    %v1100 = vxor.u32 %v1053, 2147483648
    %v1101 = vmul.f32 %v1100, 1.442695
    %v1102 = vpow.pop %v1101
    %v1103 = vadd.f32 %v1102, 1.0
    %v1104 = vrcp.pop %v1103
    %v1105 = vmul.f32 1.0, %v1104
    %v1106 = vxor.u32 %v1055, 2147483648
    %v1107 = vmul.f32 %v1106, 1.442695
    %v1108 = vpow.pop %v1107
    %v1109 = vadd.f32 %v1108, 1.0
    %v1110 = vrcp.pop %v1109
    %v1111 = vmul.f32 1.0, %v1110
    %v1112 = vtanh.pop %v1094
    %v1113 = vxor.u32 %v1096, 2147483648
    %v1114 = vmul.f32 %v1113, 1.442695
    %v1115 = vpow.pop %v1114
    %v1116 = vadd.f32 %v1115, 1.0
    %v1117 = vrcp.pop %v1116
    %v1118 = vmul.f32 1.0, %v1117
    %v1119 = vmul.f32 %v1111, %v1004
    %v1120 = vmul.f32 %v1105, %v1112
    %v1121 = vadd.f32 %v1119, %v1120
    %v1122 = vtanh.pop %v1121
    %v1123 = vmul.f32 %v1118, %v1122
    %1124 = vst [vmem:[#allocation2] sm:$0xff] %v1123
    %1125 = vst [vmem:[#allocation3] sm:$0xff] %v1121
    %v1126 = vpack.c.bf16 %v1123, %v1123
    %s1127 = scalar_lea.vmem [#allocation14], 16
    %1128 = vst [vmem:[%s1127] sm:$0xf] %v1126
    %v1129 = vld [vmem:[#allocation2] sm:$0xff]
    %v1130 = vld [vmem:[#allocation3] sm:$0xff]
    %s1131 = scalar_lea.vmem [#allocation5], 20
    %v1132 = vld [vmem:[%s1131] sm:$0xf]
    %1133 = vst [vmem:[#allocation4] sm:$0xf] %v1132
    %v1134 = vpack.c.bf16 %v1129, %v1129
    %1135 = vst [vmem:[#allocation4 + $0x4] sm:$0xf] %v1134
    %v1136 = vld [vmem:[#allocation4] sm:$0xff]
    %v1138 = vunpack.c.l.b16 %v1136
    %v1139 = vunpack.c.h.b16 %v1136
    %v1140 = vpack.c.b16 %v1138, %v1138
    %v1141 = vpack.c.b16 %v1139, %v1139
    %1144 = vmatprep.subr.bf16.mxu0 %v416
    %1145 = vmatpush1.bf16.msra.mxu0 %v415
    %1146 = vmatprep.subr.bf16.mxu0 %v412
    %1147 = vmatpush1.bf16.msra.mxu0 %v411
    %1148 = vmatprep.subr.bf16.mxu0 %v408
    %1149 = vmatpush1.bf16.msra.mxu0 %v407
    %1150 = vmatprep.subr.bf16.mxu0 %v404
    %1151 = vmatpush1.bf16.msra.mxu0 %v403
    %1152 = vmatprep.subr.bf16.mxu0 %v400
    %1153 = vmatpush1.bf16.msra.mxu0 %v399
    %1154 = vmatprep.subr.bf16.mxu0 %v396
    %1155 = vmatpush1.bf16.msra.mxu0 %v395
    %1156 = vmatprep.subr.bf16.mxu0 %v392
    %1157 = vmatpush1.bf16.msra.mxu0 %v391
    %1158 = vmatprep.subr.bf16.mxu0 %v388
    %1159 = vmatpush1.bf16.msra.mxu0 %v387
    %1160 = vmatprep.subr.bf16.mxu0 %v448
    %1161 = vmatpush2.bf16.msra.mxu0 %v447
    %1162 = vmatprep.subr.bf16.mxu0 %v444
    %1163 = vmatpush2.bf16.msra.mxu0 %v443
    %1164 = vmatprep.subr.bf16.mxu0 %v440
    %1165 = vmatpush2.bf16.msra.mxu0 %v439
    %1166 = vmatprep.subr.bf16.mxu0 %v436
    %1167 = vmatpush2.bf16.msra.mxu0 %v435
    %1168 = vmatprep.subr.bf16.mxu0 %v432
    %1169 = vmatpush2.bf16.msra.mxu0 %v431
    %1170 = vmatprep.subr.bf16.mxu0 %v428
    %1171 = vmatpush2.bf16.msra.mxu0 %v427
    %1172 = vmatprep.subr.bf16.mxu0 %v424
    %1173 = vmatpush2.bf16.msra.mxu0 %v423
    %1174 = vmatprep.subr.bf16.mxu0 %v420
    %1175 = vmatpush2.bf16.msra.mxu0 %v419
    %1176 = vmatprep.mubr.bf16.mxu0 %v1141
    %1177 = vmatmul.mubr.bf16.gmra.mxu0 %v1140
    %v1178 = vpop.f32.mrf.mxu0
    %v1179 = vadd.f32 %v171, %v1178
    %v1180 = vpop.f32.mrf.mxu0
    %v1181 = vadd.f32 %v175, %v1180
    %v1182 = vpop.f32.mrf.mxu0
    %v1183 = vpop.f32.mrf.mxu0
    %1184 = vdwg.mxu0
    %1185 = vmatprep.subr.bf16.mxu0 %v418
    %1186 = vmatpush1.bf16.msra.mxu0 %v417
    %1187 = vmatprep.subr.bf16.mxu0 %v414
    %1188 = vmatpush1.bf16.msra.mxu0 %v413
    %1189 = vmatprep.subr.bf16.mxu0 %v410
    %1190 = vmatpush1.bf16.msra.mxu0 %v409
    %1191 = vmatprep.subr.bf16.mxu0 %v406
    %1192 = vmatpush1.bf16.msra.mxu0 %v405
    %1193 = vmatprep.subr.bf16.mxu0 %v402
    %1194 = vmatpush1.bf16.msra.mxu0 %v401
    %1195 = vmatprep.subr.bf16.mxu0 %v398
    %1196 = vmatpush1.bf16.msra.mxu0 %v397
    %1197 = vmatprep.subr.bf16.mxu0 %v394
    %1198 = vmatpush1.bf16.msra.mxu0 %v393
    %1199 = vmatprep.subr.bf16.mxu0 %v390
    %1200 = vmatpush1.bf16.msra.mxu0 %v389
    %1201 = vmatprep.subr.bf16.mxu0 %v450
    %1202 = vmatpush2.bf16.msra.mxu0 %v449
    %1203 = vmatprep.subr.bf16.mxu0 %v446
    %1204 = vmatpush2.bf16.msra.mxu0 %v445
    %1205 = vmatprep.subr.bf16.mxu0 %v442
    %1206 = vmatpush2.bf16.msra.mxu0 %v441
    %1207 = vmatprep.subr.bf16.mxu0 %v438
    %1208 = vmatpush2.bf16.msra.mxu0 %v437
    %1209 = vmatprep.subr.bf16.mxu0 %v434
    %1210 = vmatpush2.bf16.msra.mxu0 %v433
    %1211 = vmatprep.subr.bf16.mxu0 %v430
    %1212 = vmatpush2.bf16.msra.mxu0 %v429
    %1213 = vmatprep.subr.bf16.mxu0 %v426
    %1214 = vmatpush2.bf16.msra.mxu0 %v425
    %1215 = vmatprep.subr.bf16.mxu0 %v422
    %1216 = vmatpush2.bf16.msra.mxu0 %v421
    %1217 = vmatprep.mubr.bf16.mxu0 %v1141
    %1218 = vmatmul.mubr.bf16.gmra.mxu0 %v1140
    %v1219 = vpop.f32.mrf.mxu0
    %v1220 = vadd.f32 %v179, %v1219
    %v1221 = vpop.f32.mrf.mxu0
    %v1222 = vadd.f32 %v183, %v1221
    %v1223 = vpop.f32.mrf.mxu0
    %v1224 = vpop.f32.mrf.mxu0
    %1225 = vdwg.mxu0
    %v1226 = vxor.u32 %v1179, 2147483648
    %v1227 = vmul.f32 %v1226, 1.442695
    %v1228 = vpow.pop %v1227
    %v1229 = vadd.f32 %v1228, 1.0
    %v1230 = vrcp.pop %v1229
    %v1231 = vmul.f32 1.0, %v1230
    %v1232 = vxor.u32 %v1181, 2147483648
    %v1233 = vmul.f32 %v1232, 1.442695
    %v1234 = vpow.pop %v1233
    %v1235 = vadd.f32 %v1234, 1.0
    %v1236 = vrcp.pop %v1235
    %v1237 = vmul.f32 1.0, %v1236
    %v1238 = vtanh.pop %v1220
    %v1239 = vxor.u32 %v1222, 2147483648
    %v1240 = vmul.f32 %v1239, 1.442695
    %v1241 = vpow.pop %v1240
    %v1242 = vadd.f32 %v1241, 1.0
    %v1243 = vrcp.pop %v1242
    %v1244 = vmul.f32 1.0, %v1243
    %v1245 = vmul.f32 %v1237, %v1130
    %v1246 = vmul.f32 %v1231, %v1238
    %v1247 = vadd.f32 %v1245, %v1246
    %v1248 = vtanh.pop %v1247
    %v1249 = vmul.f32 %v1244, %v1248
    %1250 = vst [vmem:[#allocation2] sm:$0xff] %v1249
    %1251 = vst [vmem:[#allocation3] sm:$0xff] %v1247
    %v1252 = vpack.c.bf16 %v1249, %v1249
    %s1253 = scalar_lea.vmem [#allocation14], 20
    %1254 = vst [vmem:[%s1253] sm:$0xf] %v1252
    %v1255 = vld [vmem:[#allocation2] sm:$0xff]
    %v1256 = vld [vmem:[#allocation3] sm:$0xff]
    %s1257 = scalar_lea.vmem [#allocation5], 24
    %v1258 = vld [vmem:[%s1257] sm:$0xf]
    %1259 = vst [vmem:[#allocation4] sm:$0xf] %v1258
    %v1260 = vpack.c.bf16 %v1255, %v1255
    %1261 = vst [vmem:[#allocation4 + $0x4] sm:$0xf] %v1260
    %v1262 = vld [vmem:[#allocation4] sm:$0xff]
    %v1264 = vunpack.c.l.b16 %v1262
    %v1265 = vunpack.c.h.b16 %v1262
    %v1266 = vpack.c.b16 %v1264, %v1264
    %v1267 = vpack.c.b16 %v1265, %v1265
    %1270 = vmatprep.subr.bf16.mxu0 %v416
    %1271 = vmatpush1.bf16.msra.mxu0 %v415
    %1272 = vmatprep.subr.bf16.mxu0 %v412
    %1273 = vmatpush1.bf16.msra.mxu0 %v411
    %1274 = vmatprep.subr.bf16.mxu0 %v408
    %1275 = vmatpush1.bf16.msra.mxu0 %v407
    %1276 = vmatprep.subr.bf16.mxu0 %v404
    %1277 = vmatpush1.bf16.msra.mxu0 %v403
    %1278 = vmatprep.subr.bf16.mxu0 %v400
    %1279 = vmatpush1.bf16.msra.mxu0 %v399
    %1280 = vmatprep.subr.bf16.mxu0 %v396
    %1281 = vmatpush1.bf16.msra.mxu0 %v395
    %1282 = vmatprep.subr.bf16.mxu0 %v392
    %1283 = vmatpush1.bf16.msra.mxu0 %v391
    %1284 = vmatprep.subr.bf16.mxu0 %v388
    %1285 = vmatpush1.bf16.msra.mxu0 %v387
    %1286 = vmatprep.subr.bf16.mxu0 %v448
    %1287 = vmatpush2.bf16.msra.mxu0 %v447
    %1288 = vmatprep.subr.bf16.mxu0 %v444
    %1289 = vmatpush2.bf16.msra.mxu0 %v443
    %1290 = vmatprep.subr.bf16.mxu0 %v440
    %1291 = vmatpush2.bf16.msra.mxu0 %v439
    %1292 = vmatprep.subr.bf16.mxu0 %v436
    %1293 = vmatpush2.bf16.msra.mxu0 %v435
    %1294 = vmatprep.subr.bf16.mxu0 %v432
    %1295 = vmatpush2.bf16.msra.mxu0 %v431
    %1296 = vmatprep.subr.bf16.mxu0 %v428
    %1297 = vmatpush2.bf16.msra.mxu0 %v427
    %1298 = vmatprep.subr.bf16.mxu0 %v424
    %1299 = vmatpush2.bf16.msra.mxu0 %v423
    %1300 = vmatprep.subr.bf16.mxu0 %v420
    %1301 = vmatpush2.bf16.msra.mxu0 %v419
    %1302 = vmatprep.mubr.bf16.mxu0 %v1267
    %1303 = vmatmul.mubr.bf16.gmra.mxu0 %v1266
    %v1304 = vpop.f32.mrf.mxu0
    %v1305 = vadd.f32 %v171, %v1304
    %v1306 = vpop.f32.mrf.mxu0
    %v1307 = vadd.f32 %v175, %v1306
    %v1308 = vpop.f32.mrf.mxu0
    %v1309 = vpop.f32.mrf.mxu0
    %1310 = vdwg.mxu0
    %1311 = vmatprep.subr.bf16.mxu0 %v418
    %1312 = vmatpush1.bf16.msra.mxu0 %v417
    %1313 = vmatprep.subr.bf16.mxu0 %v414
    %1314 = vmatpush1.bf16.msra.mxu0 %v413
    %1315 = vmatprep.subr.bf16.mxu0 %v410
    %1316 = vmatpush1.bf16.msra.mxu0 %v409
    %1317 = vmatprep.subr.bf16.mxu0 %v406
    %1318 = vmatpush1.bf16.msra.mxu0 %v405
    %1319 = vmatprep.subr.bf16.mxu0 %v402
    %1320 = vmatpush1.bf16.msra.mxu0 %v401
    %1321 = vmatprep.subr.bf16.mxu0 %v398
    %1322 = vmatpush1.bf16.msra.mxu0 %v397
    %1323 = vmatprep.subr.bf16.mxu0 %v394
    %1324 = vmatpush1.bf16.msra.mxu0 %v393
    %1325 = vmatprep.subr.bf16.mxu0 %v390
    %1326 = vmatpush1.bf16.msra.mxu0 %v389
    %1327 = vmatprep.subr.bf16.mxu0 %v450
    %1328 = vmatpush2.bf16.msra.mxu0 %v449
    %1329 = vmatprep.subr.bf16.mxu0 %v446
    %1330 = vmatpush2.bf16.msra.mxu0 %v445
    %1331 = vmatprep.subr.bf16.mxu0 %v442
    %1332 = vmatpush2.bf16.msra.mxu0 %v441
    %1333 = vmatprep.subr.bf16.mxu0 %v438
    %1334 = vmatpush2.bf16.msra.mxu0 %v437
    %1335 = vmatprep.subr.bf16.mxu0 %v434
    %1336 = vmatpush2.bf16.msra.mxu0 %v433
    %1337 = vmatprep.subr.bf16.mxu0 %v430
    %1338 = vmatpush2.bf16.msra.mxu0 %v429
    %1339 = vmatprep.subr.bf16.mxu0 %v426
    %1340 = vmatpush2.bf16.msra.mxu0 %v425
    %1341 = vmatprep.subr.bf16.mxu0 %v422
    %1342 = vmatpush2.bf16.msra.mxu0 %v421
    %1343 = vmatprep.mubr.bf16.mxu0 %v1267
    %1344 = vmatmul.mubr.bf16.gmra.mxu0 %v1266
    %v1345 = vpop.f32.mrf.mxu0
    %v1346 = vadd.f32 %v179, %v1345
    %v1347 = vpop.f32.mrf.mxu0
    %v1348 = vadd.f32 %v183, %v1347
    %v1349 = vpop.f32.mrf.mxu0
    %v1350 = vpop.f32.mrf.mxu0
    %1351 = vdwg.mxu0
    %v1352 = vxor.u32 %v1305, 2147483648
    %v1353 = vmul.f32 %v1352, 1.442695
    %v1354 = vpow.pop %v1353
    %v1355 = vadd.f32 %v1354, 1.0
    %v1356 = vrcp.pop %v1355
    %v1357 = vmul.f32 1.0, %v1356
    %v1358 = vxor.u32 %v1307, 2147483648
    %v1359 = vmul.f32 %v1358, 1.442695
    %v1360 = vpow.pop %v1359
    %v1361 = vadd.f32 %v1360, 1.0
    %v1362 = vrcp.pop %v1361
    %v1363 = vmul.f32 1.0, %v1362
    %v1364 = vtanh.pop %v1346
    %v1365 = vxor.u32 %v1348, 2147483648
    %v1366 = vmul.f32 %v1365, 1.442695
    %v1367 = vpow.pop %v1366
    %v1368 = vadd.f32 %v1367, 1.0
    %v1369 = vrcp.pop %v1368
    %v1370 = vmul.f32 1.0, %v1369
    %v1371 = vmul.f32 %v1363, %v1256
    %v1372 = vmul.f32 %v1357, %v1364
    %v1373 = vadd.f32 %v1371, %v1372
    %v1374 = vtanh.pop %v1373
    %v1375 = vmul.f32 %v1370, %v1374
    %1376 = vst [vmem:[#allocation2] sm:$0xff] %v1375
    %1377 = vst [vmem:[#allocation3] sm:$0xff] %v1373
    %v1378 = vpack.c.bf16 %v1375, %v1375
    %s1379 = scalar_lea.vmem [#allocation14], 24
    %1380 = vst [vmem:[%s1379] sm:$0xf] %v1378
    %v1381 = vld [vmem:[#allocation2] sm:$0xff]
    %v1382 = vld [vmem:[#allocation3] sm:$0xff]
    %s1383 = scalar_lea.vmem [#allocation5], 28
    %v1384 = vld [vmem:[%s1383] sm:$0xf]
    %1385 = vst [vmem:[#allocation4] sm:$0xf] %v1384
    %v1386 = vpack.c.bf16 %v1381, %v1381
    %1387 = vst [vmem:[#allocation4 + $0x4] sm:$0xf] %v1386
    %v1388 = vld [vmem:[#allocation4] sm:$0xff]
    %v1390 = vunpack.c.l.b16 %v1388
    %v1391 = vunpack.c.h.b16 %v1388
    %v1392 = vpack.c.b16 %v1390, %v1390
    %v1393 = vpack.c.b16 %v1391, %v1391
    %1396 = vmatprep.subr.bf16.mxu0 %v416
    %1397 = vmatpush1.bf16.msra.mxu0 %v415
    %1398 = vmatprep.subr.bf16.mxu0 %v412
    %1399 = vmatpush1.bf16.msra.mxu0 %v411
    %1400 = vmatprep.subr.bf16.mxu0 %v408
    %1401 = vmatpush1.bf16.msra.mxu0 %v407
    %1402 = vmatprep.subr.bf16.mxu0 %v404
    %1403 = vmatpush1.bf16.msra.mxu0 %v403
    %1404 = vmatprep.subr.bf16.mxu0 %v400
    %1405 = vmatpush1.bf16.msra.mxu0 %v399
    %1406 = vmatprep.subr.bf16.mxu0 %v396
    %1407 = vmatpush1.bf16.msra.mxu0 %v395
    %1408 = vmatprep.subr.bf16.mxu0 %v392
    %1409 = vmatpush1.bf16.msra.mxu0 %v391
    %1410 = vmatprep.subr.bf16.mxu0 %v388
    %1411 = vmatpush1.bf16.msra.mxu0 %v387
    %1412 = vmatprep.subr.bf16.mxu0 %v448
    %1413 = vmatpush2.bf16.msra.mxu0 %v447
    %1414 = vmatprep.subr.bf16.mxu0 %v444
    %1415 = vmatpush2.bf16.msra.mxu0 %v443
    %1416 = vmatprep.subr.bf16.mxu0 %v440
    %1417 = vmatpush2.bf16.msra.mxu0 %v439
    %1418 = vmatprep.subr.bf16.mxu0 %v436
    %1419 = vmatpush2.bf16.msra.mxu0 %v435
    %1420 = vmatprep.subr.bf16.mxu0 %v432
    %1421 = vmatpush2.bf16.msra.mxu0 %v431
    %1422 = vmatprep.subr.bf16.mxu0 %v428
    %1423 = vmatpush2.bf16.msra.mxu0 %v427
    %1424 = vmatprep.subr.bf16.mxu0 %v424
    %1425 = vmatpush2.bf16.msra.mxu0 %v423
    %1426 = vmatprep.subr.bf16.mxu0 %v420
    %1427 = vmatpush2.bf16.msra.mxu0 %v419
    %1428 = vmatprep.mubr.bf16.mxu0 %v1393
    %1429 = vmatmul.mubr.bf16.gmra.mxu0 %v1392
    %v1430 = vpop.f32.mrf.mxu0
    %v1431 = vadd.f32 %v171, %v1430
    %v1432 = vpop.f32.mrf.mxu0
    %v1433 = vadd.f32 %v175, %v1432
    %v1434 = vpop.f32.mrf.mxu0
    %v1435 = vpop.f32.mrf.mxu0
    %1436 = vdwg.mxu0
    %1437 = vmatprep.subr.bf16.mxu0 %v418
    %1438 = vmatpush1.bf16.msra.mxu0 %v417
    %1439 = vmatprep.subr.bf16.mxu0 %v414
    %1440 = vmatpush1.bf16.msra.mxu0 %v413
    %1441 = vmatprep.subr.bf16.mxu0 %v410
    %1442 = vmatpush1.bf16.msra.mxu0 %v409
    %1443 = vmatprep.subr.bf16.mxu0 %v406
    %1444 = vmatpush1.bf16.msra.mxu0 %v405
    %1445 = vmatprep.subr.bf16.mxu0 %v402
    %1446 = vmatpush1.bf16.msra.mxu0 %v401
    %1447 = vmatprep.subr.bf16.mxu0 %v398
    %1448 = vmatpush1.bf16.msra.mxu0 %v397
    %1449 = vmatprep.subr.bf16.mxu0 %v394
    %1450 = vmatpush1.bf16.msra.mxu0 %v393
    %1451 = vmatprep.subr.bf16.mxu0 %v390
    %1452 = vmatpush1.bf16.msra.mxu0 %v389
    %1453 = vmatprep.subr.bf16.mxu0 %v450
    %1454 = vmatpush2.bf16.msra.mxu0 %v449
    %1455 = vmatprep.subr.bf16.mxu0 %v446
    %1456 = vmatpush2.bf16.msra.mxu0 %v445
    %1457 = vmatprep.subr.bf16.mxu0 %v442
    %1458 = vmatpush2.bf16.msra.mxu0 %v441
    %1459 = vmatprep.subr.bf16.mxu0 %v438
    %1460 = vmatpush2.bf16.msra.mxu0 %v437
    %1461 = vmatprep.subr.bf16.mxu0 %v434
    %1462 = vmatpush2.bf16.msra.mxu0 %v433
    %1463 = vmatprep.subr.bf16.mxu0 %v430
    %1464 = vmatpush2.bf16.msra.mxu0 %v429
    %1465 = vmatprep.subr.bf16.mxu0 %v426
    %1466 = vmatpush2.bf16.msra.mxu0 %v425
    %1467 = vmatprep.subr.bf16.mxu0 %v422
    %1468 = vmatpush2.bf16.msra.mxu0 %v421
    %1469 = vmatprep.mubr.bf16.mxu0 %v1393
    %1470 = vmatmul.mubr.bf16.gmra.mxu0 %v1392
    %v1471 = vpop.f32.mrf.mxu0
    %v1472 = vadd.f32 %v179, %v1471
    %v1473 = vpop.f32.mrf.mxu0
    %v1474 = vadd.f32 %v183, %v1473
    %v1475 = vpop.f32.mrf.mxu0
    %v1476 = vpop.f32.mrf.mxu0
    %1477 = vdwg.mxu0
    %v1478 = vxor.u32 %v1431, 2147483648
    %v1479 = vmul.f32 %v1478, 1.442695
    %v1480 = vpow.pop %v1479
    %v1481 = vadd.f32 %v1480, 1.0
    %v1482 = vrcp.pop %v1481
    %v1483 = vmul.f32 1.0, %v1482
    %v1484 = vxor.u32 %v1433, 2147483648
    %v1485 = vmul.f32 %v1484, 1.442695
    %v1486 = vpow.pop %v1485
    %v1487 = vadd.f32 %v1486, 1.0
    %v1488 = vrcp.pop %v1487
    %v1489 = vmul.f32 1.0, %v1488
    %v1490 = vtanh.pop %v1472
    %v1491 = vxor.u32 %v1474, 2147483648
    %v1492 = vmul.f32 %v1491, 1.442695
    %v1493 = vpow.pop %v1492
    %v1494 = vadd.f32 %v1493, 1.0
    %v1495 = vrcp.pop %v1494
    %v1496 = vmul.f32 1.0, %v1495
    %v1497 = vmul.f32 %v1489, %v1382
    %v1498 = vmul.f32 %v1483, %v1490
    %v1499 = vadd.f32 %v1497, %v1498
    %v1500 = vtanh.pop %v1499
    %v1501 = vmul.f32 %v1496, %v1500
    %1502 = vst [vmem:[#allocation2] sm:$0xff] %v1501
    %1503 = vst [vmem:[#allocation3] sm:$0xff] %v1499
    %v1504 = vpack.c.bf16 %v1501, %v1501
    %s1505 = scalar_lea.vmem [#allocation14], 28
    %1506 = vst [vmem:[%s1505] sm:$0xf] %v1504
    %v1507 = vld [vmem:[#allocation2] sm:$0xff]
    %1508 = vst [vmem:[#allocation15] sm:$0xff] %v1507
    %v1509 = vld [vmem:[#allocation3] sm:$0xff]
    %1510 = vst [vmem:[#allocation17] sm:$0xff] %v1509
    // Predicated region
    $region46: #{tpu_custom_call.1} parent=1 // pred_check
      _
    $region47: #{tpu_custom_call.1} parent=1 // pred_check_branch
      %1512 = sbr.rel (0) target = $region49
    $region48: #{tpu_custom_call.1} parent=1 // pred_region
      %s1514 = ssub.s32 512, 512
      %1515 = vsyncadd [#allocation7], %s1514
      %s1516 = sshll.u32 [#allocation14], 4
      %s1517 = int_to_ptr.vmem [resolvable:$true] %s1516
      %1522 = dma.vmem_to_hbm [thread:$0]  %s1517, 512, %s5, [#allocation7], 64, 64, 4
    $region49: #{tpu_custom_call.1} parent=1 // pred_fallthru
      _
    // Predicated region
    $region50: #{tpu_custom_call.1} parent=1 // pred_check
      _
    $region51: #{tpu_custom_call.1} parent=1 // pred_check_branch
      %1524 = sbr.rel (0) target = $region53
    $region52: #{tpu_custom_call.1} parent=1 // pred_region
      %s1526 = ssub.s32 128, 128
      %1527 = vsyncadd [#allocation16], %s1526
      %s1529 = sshll.u32 [#allocation15], 4
      %s1530 = int_to_ptr.vmem [resolvable:$true] %s1529
      %1532 = dma.vmem_to_hbm [thread:$0]  %s1530, 128, %s6, [#allocation16]
    $region53: #{tpu_custom_call.1} parent=1 // pred_fallthru
      _
    // Predicated region
    $region54: #{tpu_custom_call.1} parent=1 // pred_check
      _
    $region55: #{tpu_custom_call.1} parent=1 // pred_check_branch
      %1534 = sbr.rel (0) target = $region57
    $region56: #{tpu_custom_call.1} parent=1 // pred_region
      %s1536 = ssub.s32 128, 128
      %1537 = vsyncadd [#allocation16], %s1536
      %s1539 = sshll.u32 [#allocation17], 4
      %s1540 = int_to_ptr.vmem [resolvable:$true] %s1539
      %1542 = dma.vmem_to_hbm [thread:$0]  %s1540, 128, %s7, [#allocation16]
    $region57: #{tpu_custom_call.1} parent=1 // pred_fallthru
      _
    // Predicated region
    $region58: #{tpu_custom_call.1} parent=1 // pred_check
      _
    $region59: #{tpu_custom_call.1} parent=1 // pred_check_branch
      %1544 = sbr.rel (0) target = $region61
    $region60: #{tpu_custom_call.1} parent=1 // pred_region
      %1545 = dma.done [#allocation7], 512
    $region61: #{tpu_custom_call.1} parent=1 // pred_fallthru
      _
    // Predicated region
    $region62: #{tpu_custom_call.1} parent=1 // pred_check
      _
    $region63: #{tpu_custom_call.1} parent=1 // pred_check_branch
      %1547 = sbr.rel (0) target = $region65
    $region64: #{tpu_custom_call.1} parent=1 // pred_region
      %1548 = dma.done [#allocation16], 128
    $region65: #{tpu_custom_call.1} parent=1 // pred_fallthru
      _
    // Predicated region
    $region66: #{tpu_custom_call.1} parent=1 // pred_check
      _
    $region67: #{tpu_custom_call.1} parent=1 // pred_check_branch
      %1550 = sbr.rel (0) target = $region69
    $region68: #{tpu_custom_call.1} parent=1 // pred_region
      %1551 = dma.done [#allocation16], 128
    $region69: #{tpu_custom_call.1} parent=1 // pred_fallthru
      _
    %1552 = vsyncpa [#allocation6], 1
    %1553 = vsyncpa [#allocation9], 1
    %1554 = vsyncpa [#allocation12], 1
    %1555 = vsyncpa [#allocation7], 1
    %1556 = vsyncpa [#allocation16], 1

</llo_original>
